<compile_context>
chip_gen: v5e
topology: v5e:2x2
jax: 0.10.0
libtpu: 0.0.40
codegen_flags: <defaults>
</compile_context>

<pallas_src>
import numpy as np
import jax
import jax.numpy as jnp
from jax.experimental import pallas as pl
from jax.experimental.pallas import tpu as pltpu

LANE = 128


def _round_up(n, m):
    return (n + m - 1) // m * m


def _auto_tile_b(B):
    """Pick a batch tile: >=2 grid steps when possible (v7x megacore), tiles
    as large as possible otherwise (fewer pipeline steps on v5e/v6e)."""
    for t in (512, 256, 128):
        if B >= 2 * t:
            return t
    return min(_round_up(max(B, 8), 8), 128)


# ----------------------------- Pallas kernel -------------------------------
def _encoder_kernel(x_ref, w1_ref, b1_ref, w2_ref, b2_ref, w3_ref, b3_ref,
                    w4_ref, b4_ref, cmask_ref, o_ref):
    """Fused Encoder forward for one batch tile.

    The x tile stays f32 so the control-column passthrough is exact; only the
    MXU operands are cast to bf16 (f32 accumulation).  The static gather /
    scatter of the PyTorch module is already baked into w1 / w4 / b4, so this
    kernel reads x once and writes the final y once.
    """
    x = x_ref[...]                                              # (tb, Pp) f32
    h = jnp.dot(x.astype(jnp.bfloat16), w1_ref[...],
                preferred_element_type=jnp.float32)
    h = jnp.maximum(h + b1_ref[...], 0.0).astype(jnp.bfloat16)
    h = jnp.dot(h, w2_ref[...], preferred_element_type=jnp.float32)
    h = jnp.maximum(h + b2_ref[...], 0.0).astype(jnp.bfloat16)
    h = jnp.dot(h, w3_ref[...], preferred_element_type=jnp.float32)
    h = jnp.maximum(h + b3_ref[...], 0.0).astype(jnp.bfloat16)
    h = jnp.dot(h, w4_ref[...], preferred_element_type=jnp.float32) + b4_ref[...]
    # control-column passthrough from the ORIGINAL f32 x (exact semantics of
    # y[:, control_indices] = x[:, control_indices]).
    o_ref[...] = jnp.where(cmask_ref[...] > 0.5, x, h).astype(o_ref.dtype)


def _encoder_pallas(x_p, consts, *, tile_b):
    """Run the fused encoder on (B_pad, P_pad) f32 activations, tiled over batch."""
    Bp, Pp = x_p.shape
    w1e, b1, w2, b2, w3, b3, w4e, b4e, cmask = consts
    H = w1e.shape[1]
    assert Bp % tile_b == 0, "batch must be padded to a multiple of tile_b"

    def full(a):  # whole-array block, constant index_map -> resident across steps
        return pl.BlockSpec(a.shape, lambda i: (0,) * a.ndim)

    flops = int(2 * Bp * (Pp * H + H * H + H * H + H * Pp))
    bytes_accessed = int(
        x_p.size * x_p.dtype.itemsize          # one read of x
        + Bp * Pp * 4                          # one write of y
        + sum(int(a.size) * a.dtype.itemsize for a in consts))

    return pl.pallas_call(
        _encoder_kernel,
        out_shape=jax.ShapeDtypeStruct((Bp, Pp), jnp.float32),
        grid=(Bp // tile_b,),
        in_specs=[pl.BlockSpec((tile_b, Pp), lambda i: (i, 0))]   # x tile
                 + [full(a) for a in consts],                      # weights/mask
        out_specs=pl.BlockSpec((tile_b, Pp), lambda i: (i, 0)),
        compiler_params=pltpu.CompilerParams(
            dimension_semantics=("parallel",)),   # batch tiles -> both TCs (v7x)
        cost_estimate=pl.CostEstimate(flops=flops, transcendentals=0,
                                      bytes_accessed=bytes_accessed),
    )(x_p, *consts)


# ------------------------------- builder / glue ------------------------------
def make_encoder_forward(params, control_indices, nxny, M, P, *, tile_b=None):
    """Build a jitted forward pass with the static gather/scatter baked into
    the weights (numpy, at build time)."""
    assert P == nxny, "boolean-mask scatter y[:, mask] requires P == nxny"
    ctrl = np.asarray(control_indices, dtype=np.int64).ravel()
    assert ctrl.size == M and np.unique(ctrl).size == M, \
        "control_indices must contain M distinct indices"

    mask_bool = np.ones(nxny, dtype=bool)
    mask_bool[ctrl] = False
    non_ctrl = np.nonzero(mask_bool)[0]                    # ascending, nxny - M

    w1, b1, w2, b2, w3, b3, w4, b4 = [np.asarray(p, np.float32) for p in params]
    Din, H, Dout = w1.shape[0], w1.shape[1], w4.shape[1]
    assert Din == nxny - M and Dout == P - M

    P_pad = _round_up(P, LANE)
    H_p = _round_up(H, LANE)       # keep hidden at its 128-multiple; do NOT pad to 256

    # ---- fold the static gather into w1: zero rows at control / pad positions
    w1e = np.zeros((P_pad, H_p), np.float32)
    w1e[non_ctrl, :H] = w1
    # ---- fold the static scatter into w4/b4: columns at non-control positions
    w4e = np.zeros((H_p, P_pad), np.float32)
    w4e[:H, non_ctrl] = w4
    b4e = np.zeros((1, P_pad), np.float32)
    b4e[0, non_ctrl] = b4.ravel()
    # ---- static control mask for the in-kernel passthrough blend
    cmask = np.zeros((1, P_pad), np.float32)
    cmask[0, ctrl] = 1.0

    def pad2(a, r, c, dt):
        return jnp.asarray(np.pad(a, ((0, r - a.shape[0]), (0, c - a.shape[1])))).astype(dt)

    consts = (
        jnp.asarray(w1e, jnp.bfloat16),
        pad2(b1, 1, H_p, jnp.float32),
        pad2(w2, H_p, H_p, jnp.bfloat16),
        pad2(b2, 1, H_p, jnp.float32),
        pad2(w3, H_p, H_p, jnp.bfloat16),
        pad2(b3, 1, H_p, jnp.float32),
        jnp.asarray(w4e, jnp.bfloat16),
        jnp.asarray(b4e, jnp.float32),
        jnp.asarray(cmask, jnp.float32),
    )

    def forward(x):
        B = x.shape[0]
        tb = tile_b if tile_b is not None else _auto_tile_b(B)
        B_p = _round_up(B, tb)
        x_p = x.astype(jnp.float32)
        if B_p != B or P_pad != nxny:
            x_p = jnp.pad(x_p, ((0, B_p - B), (0, P_pad - nxny)))
        y = _encoder_pallas(x_p, consts, tile_b=tb)
        if B_p != B or P_pad != P:
            y = y[:B, :P]
        return y.astype(x.dtype)

    return jax.jit(forward)


def init_params(key, nxny, M, hidden_dim, P):
    """Deterministic synthetic init (uniform, PyTorch-Linear-like bounds)."""
    dims = [(nxny - M, hidden_dim),
            (hidden_dim, hidden_dim),
            (hidden_dim, hidden_dim),
            (hidden_dim, P - M)]
    params = []
    for din, dout in dims:
        key, kw, kb = jax.random.split(key, 3)
        bound = 1.0 / float(np.sqrt(din))
        params.append(jax.random.uniform(kw, (din, dout), jnp.float32, -bound, bound))
        params.append(jax.random.uniform(kb, (1, dout), jnp.float32, -bound, bound))
    return params


# ------------------------------- references ----------------------------------
def _reference_forward_f32(x, params, control_indices, nxny, M, P):
    """Pure-JAX f32 reference mirroring the PyTorch module."""
    w1, b1, w2, b2, w3, b3, w4, b4 = params
    ctrl = np.asarray(control_indices)
    mask = np.ones(nxny, dtype=bool)
    mask[ctrl] = False
    non_ctrl = np.nonzero(mask)[0]
    h = x[:, non_ctrl]
    h = jnp.maximum(h @ w1 + b1, 0.0)
    h = jnp.maximum(h @ w2 + b2, 0.0)
    h = jnp.maximum(h @ w3 + b3, 0.0)
    h = h @ w4 + b4
    y = jnp.zeros((x.shape[0], P), dtype=x.dtype)
    y = y.at[:, ctrl].set(x[:, ctrl])
    y = y.at[:, non_ctrl].set(h)
    return y


def _reference_forward_bf16(x, params, control_indices, nxny, M, P):
    """Reference with the same bf16-operand / f32-accumulate arithmetic as the kernel."""
    w1, b1, w2, b2, w3, b3, w4, b4 = params
    ctrl = np.asarray(control_indices)
    mask = np.ones(nxny, dtype=bool)
    mask[ctrl] = False
    non_ctrl = np.nonzero(mask)[0]
    bf = jnp.bfloat16

    def lin(h, w, b):
        return jnp.dot(h.astype(bf), w.astype(bf),
                       preferred_element_type=jnp.float32) + b

    h = x[:, non_ctrl]
    h = jnp.maximum(lin(h, w1, b1), 0.0)
    h = jnp.maximum(lin(h, w2, b2), 0.0)
    h = jnp.maximum(lin(h, w3, b3), 0.0)
    h = lin(h, w4, b4)
    y = jnp.zeros((x.shape[0], P), dtype=x.dtype)
    y = y.at[:, ctrl].set(x[:, ctrl])
    y = y.at[:, non_ctrl].set(h)
    return y


if __name__ == "__main__":
    # Flattened 16x16 heat-eq grid; batch of 256 -> auto tile_b=128, grid=(2,)
    # ("parallel"), so both TensorCores on v7x split the batch tiles while
    # v5e/v6e only pay two ~0.35 us pipeline steps.
    nxny = 256          # 16 * 16
    P = 256             # must equal nxny for the boolean-mask scatter
    M = 8               # number of distinct control indices
    hidden_dim = 128
    B = 256

    key = jax.random.PRNGKey(0)
    k_idx, k_x, k_p = jax.random.split(key, 3)
    control_indices = np.asarray(
        jax.random.choice(k_idx, nxny, shape=(M,), replace=False))
    x = jax.random.normal(k_x, (B, nxny), jnp.float32)
    params = init_params(k_p, nxny, M, hidden_dim, P)

    forward = make_encoder_forward(params, control_indices, nxny, M, P)
    y = forward(x)
    jax.block_until_ready(y)

    # 1) tight check vs. a reference using the same bf16-operand arithmetic
    y_bf = _reference_forward_bf16(x, params, control_indices, nxny, M, P)
    np.testing.assert_allclose(np.asarray(y), np.asarray(y_bf),
                               rtol=5e-3, atol=5e-3)

    # 2) fidelity check vs. the f32 PyTorch-faithful path (bf16 weights => loose tol)
    y_f32 = _reference_forward_f32(x, params, control_indices, nxny, M, P)
    np.testing.assert_allclose(np.asarray(y), np.asarray(y_f32),
                               rtol=6e-2, atol=6e-2)

    print("KERNEL_OK")
</pallas_src>

<mosaic_0001>
module attributes {stable_mosaic.version = 11 : i64} {
  func.func @_encoder_kernel(%arg0: i32, %arg1: memref<128x256xf32, #tpu.memory_space<vmem>>, %arg2: memref<256x128xbf16, #tpu.memory_space<vmem>>, %arg3: memref<1x128xf32, #tpu.memory_space<vmem>>, %arg4: memref<128x128xbf16, #tpu.memory_space<vmem>>, %arg5: memref<1x128xf32, #tpu.memory_space<vmem>>, %arg6: memref<128x128xbf16, #tpu.memory_space<vmem>>, %arg7: memref<1x128xf32, #tpu.memory_space<vmem>>, %arg8: memref<128x256xbf16, #tpu.memory_space<vmem>>, %arg9: memref<1x256xf32, #tpu.memory_space<vmem>>, %arg10: memref<1x256xf32, #tpu.memory_space<vmem>>, %arg11: memref<128x256xf32, #tpu.memory_space<vmem>>) attributes {dimension_semantics = [#tpu.dimension_semantics<parallel>], iteration_bounds = array<i64: 2>, scalar_prefetch = 0 : i64, scratch_operands = 0 : i64, tpu.core_type = #tpu.core_type<tc>, window_params = [{transform_indices = @transform_0, window_bounds = array<i64: 128, 256>}, {pipeline_mode = #tpu.pipeline_mode<synchronous>, transform_indices = @transform_1, window_bounds = array<i64: 256, 128>}, {pipeline_mode = #tpu.pipeline_mode<synchronous>, transform_indices = @transform_2, window_bounds = array<i64: 1, 128>}, {pipeline_mode = #tpu.pipeline_mode<synchronous>, transform_indices = @transform_3, window_bounds = array<i64: 128, 128>}, {pipeline_mode = #tpu.pipeline_mode<synchronous>, transform_indices = @transform_4, window_bounds = array<i64: 1, 128>}, {pipeline_mode = #tpu.pipeline_mode<synchronous>, transform_indices = @transform_5, window_bounds = array<i64: 128, 128>}, {pipeline_mode = #tpu.pipeline_mode<synchronous>, transform_indices = @transform_6, window_bounds = array<i64: 1, 128>}, {pipeline_mode = #tpu.pipeline_mode<synchronous>, transform_indices = @transform_7, window_bounds = array<i64: 128, 256>}, {pipeline_mode = #tpu.pipeline_mode<synchronous>, transform_indices = @transform_8, window_bounds = array<i64: 1, 256>}, {pipeline_mode = #tpu.pipeline_mode<synchronous>, transform_indices = @transform_9, window_bounds = array<i64: 1, 256>}, {transform_indices = @transform_10, window_bounds = array<i64: 128, 256>}]} {
    %c0 = arith.constant 0 : index
    %c0_0 = arith.constant 0 : index
    %0 = vector.load %arg1[%c0, %c0_0] : memref<128x256xf32, #tpu.memory_space<vmem>>, vector<128x256xf32>
    %1 = arith.truncf %0 : vector<128x256xf32> to vector<128x256xbf16>
    %c0_1 = arith.constant 0 : index
    %c0_2 = arith.constant 0 : index
    %2 = vector.load %arg2[%c0_1, %c0_2] : memref<256x128xbf16, #tpu.memory_space<vmem>>, vector<256x128xbf16>
    %cst = arith.constant dense<0.000000e+00> : vector<128x128xf32>
    %3 = tpu.matmul %1, %2, %cst {dimension_numbers = #tpu.dot_dimension_numbers<[1], [0], [0], [1], [0, 0, 1, 1], [], []>} : vector<128x256xbf16>, vector<256x128xbf16>, vector<128x128xf32> -> vector<128x128xf32>
    %c0_3 = arith.constant 0 : index
    %c0_4 = arith.constant 0 : index
    %4 = vector.load %arg3[%c0_3, %c0_4] : memref<1x128xf32, #tpu.memory_space<vmem>>, vector<1x128xf32>
    %5 = vector.broadcast %4 : vector<1x128xf32> to vector<128x128xf32>
    %6 = arith.addf %3, %5 : vector<128x128xf32>
    %cst_5 = arith.constant 0.000000e+00 : f32
    %7 = vector.broadcast %cst_5 : f32 to vector<128x128xf32>
    %8 = arith.maximumf %6, %7 : vector<128x128xf32>
    %9 = arith.truncf %8 : vector<128x128xf32> to vector<128x128xbf16>
    %c0_6 = arith.constant 0 : index
    %c0_7 = arith.constant 0 : index
    %10 = vector.load %arg4[%c0_6, %c0_7] : memref<128x128xbf16, #tpu.memory_space<vmem>>, vector<128x128xbf16>
    %cst_8 = arith.constant dense<0.000000e+00> : vector<128x128xf32>
    %11 = tpu.matmul %9, %10, %cst_8 {dimension_numbers = #tpu.dot_dimension_numbers<[1], [0], [0], [1], [0, 0, 1, 1], [], []>} : vector<128x128xbf16>, vector<128x128xbf16>, vector<128x128xf32> -> vector<128x128xf32>
    %c0_9 = arith.constant 0 : index
    %c0_10 = arith.constant 0 : index
    %12 = vector.load %arg5[%c0_9, %c0_10] : memref<1x128xf32, #tpu.memory_space<vmem>>, vector<1x128xf32>
    %13 = vector.broadcast %12 : vector<1x128xf32> to vector<128x128xf32>
    %14 = arith.addf %11, %13 : vector<128x128xf32>
    %cst_11 = arith.constant 0.000000e+00 : f32
    %15 = vector.broadcast %cst_11 : f32 to vector<128x128xf32>
    %16 = arith.maximumf %14, %15 : vector<128x128xf32>
    %17 = arith.truncf %16 : vector<128x128xf32> to vector<128x128xbf16>
    %c0_12 = arith.constant 0 : index
    %c0_13 = arith.constant 0 : index
    %18 = vector.load %arg6[%c0_12, %c0_13] : memref<128x128xbf16, #tpu.memory_space<vmem>>, vector<128x128xbf16>
    %cst_14 = arith.constant dense<0.000000e+00> : vector<128x128xf32>
    %19 = tpu.matmul %17, %18, %cst_14 {dimension_numbers = #tpu.dot_dimension_numbers<[1], [0], [0], [1], [0, 0, 1, 1], [], []>} : vector<128x128xbf16>, vector<128x128xbf16>, vector<128x128xf32> -> vector<128x128xf32>
    %c0_15 = arith.constant 0 : index
    %c0_16 = arith.constant 0 : index
    %20 = vector.load %arg7[%c0_15, %c0_16] : memref<1x128xf32, #tpu.memory_space<vmem>>, vector<1x128xf32>
    %21 = vector.broadcast %20 : vector<1x128xf32> to vector<128x128xf32>
    %22 = arith.addf %19, %21 : vector<128x128xf32>
    %cst_17 = arith.constant 0.000000e+00 : f32
    %23 = vector.broadcast %cst_17 : f32 to vector<128x128xf32>
    %24 = arith.maximumf %22, %23 : vector<128x128xf32>
    %25 = arith.truncf %24 : vector<128x128xf32> to vector<128x128xbf16>
    %c0_18 = arith.constant 0 : index
    %c0_19 = arith.constant 0 : index
    %26 = vector.load %arg8[%c0_18, %c0_19] : memref<128x256xbf16, #tpu.memory_space<vmem>>, vector<128x256xbf16>
    %cst_20 = arith.constant dense<0.000000e+00> : vector<128x256xf32>
    %27 = tpu.matmul %25, %26, %cst_20 {dimension_numbers = #tpu.dot_dimension_numbers<[1], [0], [0], [1], [0, 0, 1, 1], [], []>} : vector<128x128xbf16>, vector<128x256xbf16>, vector<128x256xf32> -> vector<128x256xf32>
    %c0_21 = arith.constant 0 : index
    %c0_22 = arith.constant 0 : index
    %28 = vector.load %arg9[%c0_21, %c0_22] : memref<1x256xf32, #tpu.memory_space<vmem>>, vector<1x256xf32>
    %29 = vector.broadcast %28 : vector<1x256xf32> to vector<128x256xf32>
    %30 = arith.addf %27, %29 : vector<128x256xf32>
    %c0_23 = arith.constant 0 : index
    %c0_24 = arith.constant 0 : index
    %31 = vector.load %arg10[%c0_23, %c0_24] : memref<1x256xf32, #tpu.memory_space<vmem>>, vector<1x256xf32>
    %cst_25 = arith.constant 5.000000e-01 : f32
    %32 = vector.broadcast %cst_25 : f32 to vector<1x256xf32>
    %33 = arith.cmpf ogt, %31, %32 : vector<1x256xf32>
    %34 = vector.shape_cast %33 : vector<1x256xi1> to vector<1x256xi1>
    %35 = vector.broadcast %34 : vector<1x256xi1> to vector<128x256xi1>
    %36 = arith.select %35, %0, %30 : vector<128x256xi1>, vector<128x256xf32>
    %c0_26 = arith.constant 0 : index
    %c0_27 = arith.constant 0 : index
    %37 = vector.load %arg11[%c0_26, %c0_27] : memref<128x256xf32, #tpu.memory_space<vmem>>, vector<128x256xf32>
    tpu.vector_store %arg11[%c0_26, %c0_27], %36 {strides = array<i32>} : memref<128x256xf32, #tpu.memory_space<vmem>>, vector<128x256xf32>,
    return
  }
  func.func @transform_0(%arg0: i32) -> (i32, i32) {
    %c0_i32 = arith.constant 0 : i32
    %c0_i32_0 = arith.constant 0 : i32
    return %arg0, %c0_i32 : i32, i32
  }
  func.func @transform_1(%arg0: i32) -> (i32, i32) {
    %c0_i32 = arith.constant 0 : i32
    %c0_i32_0 = arith.constant 0 : i32
    %c0_i32_1 = arith.constant 0 : i32
    return %c0_i32, %c0_i32_0 : i32, i32
  }
  func.func @transform_2(%arg0: i32) -> (i32, i32) {
    %c0_i32 = arith.constant 0 : i32
    %c0_i32_0 = arith.constant 0 : i32
    %c0_i32_1 = arith.constant 0 : i32
    return %c0_i32, %c0_i32_0 : i32, i32
  }
  func.func @transform_3(%arg0: i32) -> (i32, i32) {
    %c0_i32 = arith.constant 0 : i32
    %c0_i32_0 = arith.constant 0 : i32
    %c0_i32_1 = arith.constant 0 : i32
    return %c0_i32, %c0_i32_0 : i32, i32
  }
  func.func @transform_4(%arg0: i32) -> (i32, i32) {
    %c0_i32 = arith.constant 0 : i32
    %c0_i32_0 = arith.constant 0 : i32
    %c0_i32_1 = arith.constant 0 : i32
    return %c0_i32, %c0_i32_0 : i32, i32
  }
  func.func @transform_5(%arg0: i32) -> (i32, i32) {
    %c0_i32 = arith.constant 0 : i32
    %c0_i32_0 = arith.constant 0 : i32
    %c0_i32_1 = arith.constant 0 : i32
    return %c0_i32, %c0_i32_0 : i32, i32
  }
  func.func @transform_6(%arg0: i32) -> (i32, i32) {
    %c0_i32 = arith.constant 0 : i32
    %c0_i32_0 = arith.constant 0 : i32
    %c0_i32_1 = arith.constant 0 : i32
    return %c0_i32, %c0_i32_0 : i32, i32
  }
  func.func @transform_7(%arg0: i32) -> (i32, i32) {
    %c0_i32 = arith.constant 0 : i32
    %c0_i32_0 = arith.constant 0 : i32
    %c0_i32_1 = arith.constant 0 : i32
    return %c0_i32, %c0_i32_0 : i32, i32
  }
  func.func @transform_8(%arg0: i32) -> (i32, i32) {
    %c0_i32 = arith.constant 0 : i32
    %c0_i32_0 = arith.constant 0 : i32
    %c0_i32_1 = arith.constant 0 : i32
    return %c0_i32, %c0_i32_0 : i32, i32
  }
  func.func @transform_9(%arg0: i32) -> (i32, i32) {
    %c0_i32 = arith.constant 0 : i32
    %c0_i32_0 = arith.constant 0 : i32
    %c0_i32_1 = arith.constant 0 : i32
    return %c0_i32, %c0_i32_0 : i32, i32
  }
  func.func @transform_10(%arg0: i32) -> (i32, i32) {
    %c0_i32 = arith.constant 0 : i32
    %c0_i32_0 = arith.constant 0 : i32
    return %arg0, %c0_i32 : i32, i32
  }
}

</mosaic_0001>

<llo_original>
// kernel: forward.1
$region0: #{forward.1}
  #allocation0 [shape = 'u32[]', space=smem, size = 0x4, offset = 0x4, fixed_abs, tag = 'smem constant byte address 0x4 - core index']
  #allocation1 [shape = 'u32[72,128]{1,0:T(1,128)}', space=vmem, size = 0x9000, scoped, tag = 'internal scratch']
  %s0 = inlined_call_operand.hbm [shape: f32[256,256], index: 0, kind: input, shape index: {}]
  %s1 = inlined_call_operand.hbm [shape: bf16[256,128], index: 1, kind: input, shape index: {}]
  %s2 = inlined_call_operand.hbm [shape: f32[1,128], index: 2, kind: input, shape index: {}]
  %s3 = inlined_call_operand.hbm [shape: bf16[128,128], index: 3, kind: input, shape index: {}]
  %s4 = inlined_call_operand.hbm [shape: f32[1,128], index: 4, kind: input, shape index: {}]
  %s5 = inlined_call_operand.hbm [shape: bf16[128,128], index: 5, kind: input, shape index: {}]
  %s6 = inlined_call_operand.vmem [shape: f32[1,128], index: 6, kind: input, shape index: {}]
  %s7 = inlined_call_operand.hbm [shape: bf16[128,256], index: 7, kind: input, shape index: {}]
  %s8 = inlined_call_operand.vmem [shape: f32[1,256], index: 8, kind: input, shape index: {}]
  %s9 = inlined_call_operand.vmem [shape: f32[1,256], index: 9, kind: input, shape index: {}]
  %s10 = inlined_call_operand.hbm [shape: f32[256,256], index: 10, kind: output, shape index: {}]
  %s11 = sld [smem:[#allocation0]]
  $region101: #{forward.1} parent=0
    _
  %s13 = ssub.s32 1, %s11
  %s14 = scalar_select 0, %s13, %s11
  $region1: #{forward.1} parent=0
    #allocation2 [shape = 'u8[262144]{0}', space=vmem, size = 0x40000, scoped, tag = 'input window, operand 0']
    #allocation3 [shape = 's32[2]{0}', space=sflag, size = 0x8, scoped, tag = 'scoped memory for forward.1']
    #allocation4 [shape = 's32[2]{0}', space=sflag, size = 0x8, scoped, tag = 'scoped memory for forward.1']
    #allocation5 [shape = 'u8[65536]{0}', space=vmem, size = 0x10000, scoped, tag = 'input window, operand 1, single buffered']
    #allocation6 [shape = 's32[1]{0}', space=sflag, size = 0x4, scoped, tag = 'scoped memory for forward.1']
    #allocation7 [shape = 'u8[512]{0}', space=vmem, size = 0x400, scoped, tag = 'input window, operand 2, single buffered']
    #allocation8 [shape = 'u8[32768]{0}', space=vmem, size = 0x8000, scoped, tag = 'input window, operand 3, single buffered']
    #allocation9 [shape = 's32[1]{0}', space=sflag, size = 0x4, scoped, tag = 'scoped memory for forward.1']
    #allocation10 [shape = 'u8[512]{0}', space=vmem, size = 0x400, scoped, tag = 'input window, operand 4, single buffered']
    #allocation11 [shape = 'u8[32768]{0}', space=vmem, size = 0x8000, scoped, tag = 'input window, operand 5, single buffered']
    #allocation12 [shape = 's32[1]{0}', space=sflag, size = 0x4, scoped, tag = 'scoped memory for forward.1']
    #allocation13 [shape = 'u8[65536]{0}', space=vmem, size = 0x10000, scoped, tag = 'input window, operand 7, single buffered']
    #allocation14 [shape = 'u8[262144]{0}', space=vmem, size = 0x40000, scoped, tag = 'output window, operand 0']
    %15 = vsyncpa [#allocation3], 0
    %s16 = scalar_lea.sflag [#allocation3], 1
    %17 = vsyncpa %s16, 0
    %18 = vsyncpa [#allocation6], 0
    %19 = vsyncpa [#allocation9], 0
    %20 = vsyncpa [#allocation12], 0
    %21 = vsyncpa [#allocation4], 0
    %s22 = scalar_lea.sflag [#allocation4], 1
    %23 = vsyncpa %s22, 0
    loop: start=0, step=1, limit=4
    $region2: #{forward.1} parent=1 // loop_pre_header
      _
    $region3: #{forward.1} parent=1 // loop_header
      %s25 = sphi 0, %s29
      %p26 = scmp.ge.s32.totalorder %s25, 4
      %s35 = sphi 0, %s37
      %s38 = sphi 0, %s35
      %s39 = sphi 0, %s38
      %s55 = sphi 0, %s39
      %s59 = sphi 0, %s59
      %s61 = sphi 0, %s59
      %s62 = sphi 0, %s61
      %s76 = sphi 0, %s62
      %s80 = sphi 0, %s80
      %s82 = sphi 0, %s80
      %s83 = sphi 0, %s82
      %s97 = sphi 0, %s83
      %s101 = sphi 0, %s101
      %s103 = sphi 0, %s101
      %s104 = sphi 0, %s103
      %s118 = sphi 0, %s104
      %s122 = sphi 0, %s122
      %s124 = sphi 0, %s122
      %s125 = sphi 0, %s124
      %s139 = sphi 0, %s125
      %s143 = sphi 0, %s143
      %s145 = sphi 0, %s143
      %s146 = sphi 0, %s145
      %s160 = sphi 0, %s146
      %s164 = sphi 0, %s164
      %s166 = sphi 0, %s164
      %s167 = sphi 0, %s166
      %s181 = sphi 0, %s167
      %s185 = sphi 0, %s185
      %s187 = sphi 0, %s185
      %s188 = sphi 0, %s187
      %s202 = sphi 0, %s188
      %s206 = sphi 0, %s206
      %s208 = sphi 0, %s206
      %s209 = sphi 0, %s208
      %s223 = sphi 0, %s209
      %s227 = sphi 0, %s227
      %s229 = sphi 0, %s227
      %s230 = sphi 0, %s229
      %s244 = sphi 0, %s230
      %s250 = sphi 0, %s252
      %s253 = sphi 0, %s250
      %s254 = sphi 0, %s253
      %s270 = sphi 0, %s254
    $region4: #{forward.1} parent=1 // loop_header_branch
      %28 = sbr.rel (%p26) target = $region8
    $region5: #{forward.1} parent=1 // loop_body
      %s30 = ssub.s32 %s25, 1
      %s31 = ssub.s32 %s25, 2
      %s32 = sadd.s32 %s25, 1
      %s33 = ssub.s32 %s25, %s32
      %p34 = scmp.eq.s32.totalorder %s33, 0
      %s36 = sadd.s32 %s35, 1
      %s37 = scalar_select %p34, %s35, %s36
      %p40 = pneg %p34
      %p41 = scmp.eq.s32.totalorder %s25, 1
      %p42 = por %p40, %p41
      %p43 = scmp.ne.s32.totalorder %s35, %s38
      %p44 = scmp.eq.s32.totalorder %s25, 0
      %p45 = por %p43, %p44
      %p46 = scmp.ne.s32.totalorder %s35, %s38
      %p47 = scmp.eq.s32.totalorder %s30, 1
      %p48 = por %p46, %p47
      %p49 = scmp.ne.s32.totalorder %s38, %s39
      %p50 = scmp.eq.s32.totalorder %s30, 0
      %p51 = por %p49, %p50
      %p52 = scmp.ne.s32.totalorder %s38, %s39
      %p53 = scmp.eq.s32.totalorder %s31, 1
      %p54 = por %p52, %p53
      %p56 = scmp.ne.s32.totalorder %s39, %s55
      %p57 = scmp.eq.s32.totalorder %s31, 0
      %p58 = por %p56, %p57
      %s60 = sadd.s32 %s59, 1
      %p63 = scmp.eq.s32.totalorder %s25, 1
      %p64 = scmp.ne.s32.totalorder %s59, %s61
      %p65 = scmp.eq.s32.totalorder %s25, 0
      %p66 = por %p64, %p65
      %p67 = scmp.ne.s32.totalorder %s59, %s61
      %p68 = scmp.eq.s32.totalorder %s30, 1
      %p69 = por %p67, %p68
      %p70 = scmp.ne.s32.totalorder %s61, %s62
      %p71 = scmp.eq.s32.totalorder %s30, 0
      %p72 = por %p70, %p71
      %p73 = scmp.ne.s32.totalorder %s61, %s62
      %p74 = scmp.eq.s32.totalorder %s31, 1
      %p75 = por %p73, %p74
      %p77 = scmp.ne.s32.totalorder %s62, %s76
      %p78 = scmp.eq.s32.totalorder %s31, 0
      %p79 = por %p77, %p78
      %s81 = sadd.s32 %s80, 1
      %p84 = scmp.eq.s32.totalorder %s25, 1
      %p85 = scmp.ne.s32.totalorder %s80, %s82
      %p86 = scmp.eq.s32.totalorder %s25, 0
      %p87 = por %p85, %p86
      %p88 = scmp.ne.s32.totalorder %s80, %s82
      %p89 = scmp.eq.s32.totalorder %s30, 1
      %p90 = por %p88, %p89
      %p91 = scmp.ne.s32.totalorder %s82, %s83
      %p92 = scmp.eq.s32.totalorder %s30, 0
      %p93 = por %p91, %p92
      %p94 = scmp.ne.s32.totalorder %s82, %s83
      %p95 = scmp.eq.s32.totalorder %s31, 1
      %p96 = por %p94, %p95
      %p98 = scmp.ne.s32.totalorder %s83, %s97
      %p99 = scmp.eq.s32.totalorder %s31, 0
      %p100 = por %p98, %p99
      %s102 = sadd.s32 %s101, 1
      %p105 = scmp.eq.s32.totalorder %s25, 1
      %p106 = scmp.ne.s32.totalorder %s101, %s103
      %p107 = scmp.eq.s32.totalorder %s25, 0
      %p108 = por %p106, %p107
      %p109 = scmp.ne.s32.totalorder %s101, %s103
      %p110 = scmp.eq.s32.totalorder %s30, 1
      %p111 = por %p109, %p110
      %p112 = scmp.ne.s32.totalorder %s103, %s104
      %p113 = scmp.eq.s32.totalorder %s30, 0
      %p114 = por %p112, %p113
      %p115 = scmp.ne.s32.totalorder %s103, %s104
      %p116 = scmp.eq.s32.totalorder %s31, 1
      %p117 = por %p115, %p116
      %p119 = scmp.ne.s32.totalorder %s104, %s118
      %p120 = scmp.eq.s32.totalorder %s31, 0
      %p121 = por %p119, %p120
      %s123 = sadd.s32 %s122, 1
      %p126 = scmp.eq.s32.totalorder %s25, 1
      %p127 = scmp.ne.s32.totalorder %s122, %s124
      %p128 = scmp.eq.s32.totalorder %s25, 0
      %p129 = por %p127, %p128
      %p130 = scmp.ne.s32.totalorder %s122, %s124
      %p131 = scmp.eq.s32.totalorder %s30, 1
      %p132 = por %p130, %p131
      %p133 = scmp.ne.s32.totalorder %s124, %s125
      %p134 = scmp.eq.s32.totalorder %s30, 0
      %p135 = por %p133, %p134
      %p136 = scmp.ne.s32.totalorder %s124, %s125
      %p137 = scmp.eq.s32.totalorder %s31, 1
      %p138 = por %p136, %p137
      %p140 = scmp.ne.s32.totalorder %s125, %s139
      %p141 = scmp.eq.s32.totalorder %s31, 0
      %p142 = por %p140, %p141
      %s144 = sadd.s32 %s143, 1
      %p147 = scmp.eq.s32.totalorder %s25, 1
      %p148 = scmp.ne.s32.totalorder %s143, %s145
      %p149 = scmp.eq.s32.totalorder %s25, 0
      %p150 = por %p148, %p149
      %p151 = scmp.ne.s32.totalorder %s143, %s145
      %p152 = scmp.eq.s32.totalorder %s30, 1
      %p153 = por %p151, %p152
      %p154 = scmp.ne.s32.totalorder %s145, %s146
      %p155 = scmp.eq.s32.totalorder %s30, 0
      %p156 = por %p154, %p155
      %p157 = scmp.ne.s32.totalorder %s145, %s146
      %p158 = scmp.eq.s32.totalorder %s31, 1
      %p159 = por %p157, %p158
      %p161 = scmp.ne.s32.totalorder %s146, %s160
      %p162 = scmp.eq.s32.totalorder %s31, 0
      %p163 = por %p161, %p162
      %s165 = sadd.s32 %s164, 1
      %p168 = scmp.eq.s32.totalorder %s25, 1
      %p169 = scmp.ne.s32.totalorder %s164, %s166
      %p170 = scmp.eq.s32.totalorder %s25, 0
      %p171 = por %p169, %p170
      %p172 = scmp.ne.s32.totalorder %s164, %s166
      %p173 = scmp.eq.s32.totalorder %s30, 1
      %p174 = por %p172, %p173
      %p175 = scmp.ne.s32.totalorder %s166, %s167
      %p176 = scmp.eq.s32.totalorder %s30, 0
      %p177 = por %p175, %p176
      %p178 = scmp.ne.s32.totalorder %s166, %s167
      %p179 = scmp.eq.s32.totalorder %s31, 1
      %p180 = por %p178, %p179
      %p182 = scmp.ne.s32.totalorder %s167, %s181
      %p183 = scmp.eq.s32.totalorder %s31, 0
      %p184 = por %p182, %p183
      %s186 = sadd.s32 %s185, 1
      %p189 = scmp.eq.s32.totalorder %s25, 1
      %p190 = scmp.ne.s32.totalorder %s185, %s187
      %p191 = scmp.eq.s32.totalorder %s25, 0
      %p192 = por %p190, %p191
      %p193 = scmp.ne.s32.totalorder %s185, %s187
      %p194 = scmp.eq.s32.totalorder %s30, 1
      %p195 = por %p193, %p194
      %p196 = scmp.ne.s32.totalorder %s187, %s188
      %p197 = scmp.eq.s32.totalorder %s30, 0
      %p198 = por %p196, %p197
      %p199 = scmp.ne.s32.totalorder %s187, %s188
      %p200 = scmp.eq.s32.totalorder %s31, 1
      %p201 = por %p199, %p200
      %p203 = scmp.ne.s32.totalorder %s188, %s202
      %p204 = scmp.eq.s32.totalorder %s31, 0
      %p205 = por %p203, %p204
      %s207 = sadd.s32 %s206, 1
      %p210 = scmp.eq.s32.totalorder %s25, 1
      %p211 = scmp.ne.s32.totalorder %s206, %s208
      %p212 = scmp.eq.s32.totalorder %s25, 0
      %p213 = por %p211, %p212
      %p214 = scmp.ne.s32.totalorder %s206, %s208
      %p215 = scmp.eq.s32.totalorder %s30, 1
      %p216 = por %p214, %p215
      %p217 = scmp.ne.s32.totalorder %s208, %s209
      %p218 = scmp.eq.s32.totalorder %s30, 0
      %p219 = por %p217, %p218
      %p220 = scmp.ne.s32.totalorder %s208, %s209
      %p221 = scmp.eq.s32.totalorder %s31, 1
      %p222 = por %p220, %p221
      %p224 = scmp.ne.s32.totalorder %s209, %s223
      %p225 = scmp.eq.s32.totalorder %s31, 0
      %p226 = por %p224, %p225
      %s228 = sadd.s32 %s227, 1
      %p231 = scmp.eq.s32.totalorder %s25, 1
      %p232 = scmp.ne.s32.totalorder %s227, %s229
      %p233 = scmp.eq.s32.totalorder %s25, 0
      %p234 = por %p232, %p233
      %p235 = scmp.ne.s32.totalorder %s227, %s229
      %p236 = scmp.eq.s32.totalorder %s30, 1
      %p237 = por %p235, %p236
      %p238 = scmp.ne.s32.totalorder %s229, %s230
      %p239 = scmp.eq.s32.totalorder %s30, 0
      %p240 = por %p238, %p239
      %p241 = scmp.ne.s32.totalorder %s229, %s230
      %p242 = scmp.eq.s32.totalorder %s31, 1
      %p243 = por %p241, %p242
      %p245 = scmp.ne.s32.totalorder %s230, %s244
      %p246 = scmp.eq.s32.totalorder %s31, 0
      %p247 = por %p245, %p246
      %s248 = ssub.s32 %s25, %s32
      %p249 = scmp.eq.s32.totalorder %s248, 0
      %s251 = sadd.s32 %s250, 1
      %s252 = scalar_select %p249, %s250, %s251
      %p255 = pneg %p249
      %p256 = scmp.eq.s32.totalorder %s25, 1
      %p257 = por %p255, %p256
      %p258 = scmp.ne.s32.totalorder %s250, %s253
      %p259 = scmp.eq.s32.totalorder %s25, 0
      %p260 = por %p258, %p259
      %p261 = scmp.ne.s32.totalorder %s250, %s253
      %p262 = scmp.eq.s32.totalorder %s30, 1
      %p263 = por %p261, %p262
      %p264 = scmp.ne.s32.totalorder %s253, %s254
      %p265 = scmp.eq.s32.totalorder %s30, 0
      %p266 = por %p264, %p265
      %p267 = scmp.ne.s32.totalorder %s253, %s254
      %p268 = scmp.eq.s32.totalorder %s31, 1
      %p269 = por %p267, %p268
      %p271 = scmp.ne.s32.totalorder %s254, %s270
      %p272 = scmp.eq.s32.totalorder %s31, 0
      %p273 = por %p271, %p272
      %p274 = scmp.le.s32.totalorder 1, %s25
      %p275 = scmp.lt.s32.totalorder %s25, 3
      %p276 = pnand %p274, %p275
      %p277 = pneg %p276
      // Predicated region
      $region9: #{forward.1} parent=5 // pred_check
        _
      $region10: #{forward.1} parent=5 // pred_check_branch
        %279 = sbr.rel (%p276) target = $region12
      $region11: #{forward.1} parent=5 // pred_region
        %s280 = ssub.s32 %s25, 1
        // Predicated region
        $region13: #{forward.1} parent=11 // pred_check
          %p281 = pneg %p72
        $region14: #{forward.1} parent=11 // pred_check_branch
          %283 = sbr.rel (%p281) target = $region16
        $region15: #{forward.1} parent=11 // pred_region
          %285 = vsyncadd [#allocation6], 0
          %s286 = sshll.u32 %s1, 4
          %s287 = int_to_ptr.hbm [resolvable:$true] %s286
          %s288 = sshll.u32 [#allocation5], 4
          %s289 = int_to_ptr.vmem [resolvable:$true] %s288
          %294 = dma.hbm_to_vmem [thread:$0]  %s287, 2048, %s289, [#allocation6], 64, 64, 4
        $region16: #{forward.1} parent=11 // pred_fallthru
          _
        // Predicated region
        $region17: #{forward.1} parent=11 // pred_check
          %p295 = pneg %p93
        $region18: #{forward.1} parent=11 // pred_check_branch
          %297 = sbr.rel (%p295) target = $region20
        $region19: #{forward.1} parent=11 // pred_region
          %299 = vsyncadd [#allocation6], 0
          %s301 = sshll.u32 %s2, 4
          %s302 = int_to_ptr.hbm [resolvable:$true] %s301
          %s303 = sshll.u32 [#allocation7], 4
          %s304 = int_to_ptr.vmem [resolvable:$true] %s303
          %306 = dma.hbm_to_vmem [thread:$0]  %s302, 16, %s304, [#allocation6]
        $region20: #{forward.1} parent=11 // pred_fallthru
          _
        // Predicated region
        $region21: #{forward.1} parent=11 // pred_check
          %p307 = pneg %p114
        $region22: #{forward.1} parent=11 // pred_check_branch
          %309 = sbr.rel (%p307) target = $region24
        $region23: #{forward.1} parent=11 // pred_region
          %311 = vsyncadd [#allocation9], 0
          %s312 = sshll.u32 %s3, 4
          %s313 = int_to_ptr.hbm [resolvable:$true] %s312
          %s314 = sshll.u32 [#allocation8], 4
          %s315 = int_to_ptr.vmem [resolvable:$true] %s314
          %320 = dma.hbm_to_vmem [thread:$0]  %s313, 1024, %s315, [#allocation9], 64, 64, 4
        $region24: #{forward.1} parent=11 // pred_fallthru
          _
        // Predicated region
        $region25: #{forward.1} parent=11 // pred_check
          %p321 = pneg %p135
        $region26: #{forward.1} parent=11 // pred_check_branch
          %323 = sbr.rel (%p321) target = $region28
        $region27: #{forward.1} parent=11 // pred_region
          %325 = vsyncadd [#allocation9], 0
          %s327 = sshll.u32 %s4, 4
          %s328 = int_to_ptr.hbm [resolvable:$true] %s327
          %s329 = sshll.u32 [#allocation10], 4
          %s330 = int_to_ptr.vmem [resolvable:$true] %s329
          %332 = dma.hbm_to_vmem [thread:$0]  %s328, 16, %s330, [#allocation9]
        $region28: #{forward.1} parent=11 // pred_fallthru
          _
        // Predicated region
        $region29: #{forward.1} parent=11 // pred_check
          %p333 = pneg %p156
        $region30: #{forward.1} parent=11 // pred_check_branch
          %335 = sbr.rel (%p333) target = $region32
        $region31: #{forward.1} parent=11 // pred_region
          %337 = vsyncadd [#allocation12], 0
          %s338 = sshll.u32 %s5, 4
          %s339 = int_to_ptr.hbm [resolvable:$true] %s338
          %s340 = sshll.u32 [#allocation11], 4
          %s341 = int_to_ptr.vmem [resolvable:$true] %s340
          %346 = dma.hbm_to_vmem [thread:$0]  %s339, 1024, %s341, [#allocation12], 64, 64, 4
        $region32: #{forward.1} parent=11 // pred_fallthru
          _
        // Predicated region
        $region33: #{forward.1} parent=11 // pred_check
          %p347 = pneg %p177
        $region34: #{forward.1} parent=11 // pred_check_branch
          %349 = sbr.rel (%p347) target = $region36
        $region35: #{forward.1} parent=11 // pred_region
          _
        $region36: #{forward.1} parent=11 // pred_fallthru
          _
        // Predicated region
        $region37: #{forward.1} parent=11 // pred_check
          %p350 = pneg %p198
        $region38: #{forward.1} parent=11 // pred_check_branch
          %352 = sbr.rel (%p350) target = $region40
        $region39: #{forward.1} parent=11 // pred_region
          %354 = vsyncadd [#allocation12], 0
          %s355 = sshll.u32 %s7, 4
          %s356 = int_to_ptr.hbm [resolvable:$true] %s355
          %s357 = sshll.u32 [#allocation13], 4
          %s358 = int_to_ptr.vmem [resolvable:$true] %s357
          %363 = dma.hbm_to_vmem [thread:$0]  %s356, 2048, %s358, [#allocation12], 128, 128, 8
        $region40: #{forward.1} parent=11 // pred_fallthru
          _
        // Predicated region
        $region41: #{forward.1} parent=11 // pred_check
          %p364 = pneg %p219
        $region42: #{forward.1} parent=11 // pred_check_branch
          %366 = sbr.rel (%p364) target = $region44
        $region43: #{forward.1} parent=11 // pred_region
          _
        $region44: #{forward.1} parent=11 // pred_fallthru
          _
        // Predicated region
        $region45: #{forward.1} parent=11 // pred_check
          %p367 = pneg %p240
        $region46: #{forward.1} parent=11 // pred_check_branch
          %369 = sbr.rel (%p367) target = $region48
        $region47: #{forward.1} parent=11 // pred_region
          _
        $region48: #{forward.1} parent=11 // pred_fallthru
          _
      $region12: #{forward.1} parent=5 // pred_fallthru
        _
      %p370 = scmp.lt.s32.totalorder %s25, 2
      // Predicated region
      $region49: #{forward.1} parent=5 // pred_check
        %p371 = pneg %p370
      $region50: #{forward.1} parent=5 // pred_check_branch
        %373 = sbr.rel (%p371) target = $region52
      $region51: #{forward.1} parent=5 // pred_region
        // Predicated region
        $region53: #{forward.1} parent=51 // pred_check
          %p374 = pneg %p45
        $region54: #{forward.1} parent=51 // pred_check_branch
          %376 = sbr.rel (%p374) target = $region56
        $region55: #{forward.1} parent=51 // pred_region
          %s377 = sand.u32 %s35, 1
          %s378 = scalar_lea.sflag [#allocation3], %s377
          %s379 = sand.u32 %s35, 1
          %s380 = smul.addr %s379, 256
          %s381 = scalar_lea.vmem [#allocation2], %s380
          %s382 = smul.u32 16, %s25
          %384 = vsyncadd %s378, 0
          %s385 = smul.addr %s382, 2
          %s386 = smul.addr %s385, 8
          %s387 = scalar_lea.hbm %s0, %s386
          %s388 = sshll.u32 %s387, 4
          %s389 = int_to_ptr.hbm [resolvable:$true] %s388
          %s390 = sshll.u32 %s381, 4
          %s391 = int_to_ptr.vmem [resolvable:$true] %s390
          %396 = dma.hbm_to_vmem [thread:$0]  %s389, 4096, %s391, %s378, 256, 256, 16
        $region56: #{forward.1} parent=51 // pred_fallthru
          _
      $region52: #{forward.1} parent=5 // pred_fallthru
        _
      %p397 = scmp.le.s32.totalorder 1, %s25
      %p398 = scmp.lt.s32.totalorder %s25, 3
      %p399 = pnand %p397, %p398
      %p400 = pneg %p399
      // Predicated region
      $region57: #{forward.1} parent=5 // pred_check
        _
      $region58: #{forward.1} parent=5 // pred_check_branch
        %402 = sbr.rel (%p399) target = $region60
      $region59: #{forward.1} parent=5 // pred_region
        %s403 = ssub.s32 %s25, 1
        %s404 = sand.u32 %s38, 1
        %s405 = scalar_lea.sflag [#allocation3], %s404
        %s406 = sand.u32 %s38, 1
        %s407 = smul.addr %s406, 256
        %s408 = scalar_lea.vmem [#allocation2], %s407
        // Predicated region
        $region61: #{forward.1} parent=59 // pred_check
          %p409 = pneg %p51
        $region62: #{forward.1} parent=59 // pred_check_branch
          %411 = sbr.rel (%p409) target = $region64
        $region63: #{forward.1} parent=59 // pred_region
          %413 = dma.done %s405, 4096
        $region64: #{forward.1} parent=59 // pred_fallthru
          _
        // Predicated region
        $region65: #{forward.1} parent=59 // pred_check
          %p414 = pneg %p72
        $region66: #{forward.1} parent=59 // pred_check_branch
          %416 = sbr.rel (%p414) target = $region68
        $region67: #{forward.1} parent=59 // pred_region
          %418 = dma.done [#allocation6], 2048
        $region68: #{forward.1} parent=59 // pred_fallthru
          _
        // Predicated region
        $region69: #{forward.1} parent=59 // pred_check
          %p419 = pneg %p93
        $region70: #{forward.1} parent=59 // pred_check_branch
          %421 = sbr.rel (%p419) target = $region72
        $region71: #{forward.1} parent=59 // pred_region
          %423 = dma.done [#allocation6], 16
        $region72: #{forward.1} parent=59 // pred_fallthru
          _
        // Predicated region
        $region73: #{forward.1} parent=59 // pred_check
          %p424 = pneg %p114
        $region74: #{forward.1} parent=59 // pred_check_branch
          %426 = sbr.rel (%p424) target = $region76
        $region75: #{forward.1} parent=59 // pred_region
          %428 = dma.done [#allocation9], 1024
        $region76: #{forward.1} parent=59 // pred_fallthru
          _
        // Predicated region
        $region77: #{forward.1} parent=59 // pred_check
          %p429 = pneg %p135
        $region78: #{forward.1} parent=59 // pred_check_branch
          %431 = sbr.rel (%p429) target = $region80
        $region79: #{forward.1} parent=59 // pred_region
          %433 = dma.done [#allocation9], 16
        $region80: #{forward.1} parent=59 // pred_fallthru
          _
        // Predicated region
        $region81: #{forward.1} parent=59 // pred_check
          %p434 = pneg %p156
        $region82: #{forward.1} parent=59 // pred_check_branch
          %436 = sbr.rel (%p434) target = $region84
        $region83: #{forward.1} parent=59 // pred_region
          %438 = dma.done [#allocation12], 1024
        $region84: #{forward.1} parent=59 // pred_fallthru
          _
        // Predicated region
        $region85: #{forward.1} parent=59 // pred_check
          %p439 = pneg %p198
        $region86: #{forward.1} parent=59 // pred_check_branch
          %441 = sbr.rel (%p439) target = $region88
        $region87: #{forward.1} parent=59 // pred_region
          %443 = dma.done [#allocation12], 2048
        $region88: #{forward.1} parent=59 // pred_fallthru
          _
        %s444 = sand.u32 %s38, 1
        %s445 = scalar_lea.sflag [#allocation3], %s444
        %s446 = sand.u32 %s38, 1
        %s447 = smul.addr %s446, 256
        %s448 = scalar_lea.vmem [#allocation2], %s447
        %p449 = pneg %p51
        %p450 = pneg %p48
        %p451 = pneg %p72
        %p452 = pneg %p69
        %p453 = pneg %p93
        %p454 = pneg %p90
        %p455 = pneg %p114
        %p456 = pneg %p111
        %p457 = pneg %p135
        %p458 = pneg %p132
        %p459 = pneg %p156
        %p460 = pneg %p153
        %p461 = pneg %p177
        %p462 = pneg %p174
        %p463 = pneg %p198
        %p464 = pneg %p195
        %p465 = pneg %p219
        %p466 = pneg %p216
        %p467 = pneg %p240
        %p468 = pneg %p237
        %p469 = pneg %p266
        %p470 = pneg %p263
        %s471 = sand.u32 %s253, 1
        %s472 = scalar_lea.sflag [#allocation4], %s471
        %s473 = sand.u32 %s253, 1
        %s474 = smul.addr %s473, 256
        %s475 = scalar_lea.vmem [#allocation14], %s474
        %s476 = smul.u32 16, %s30
        %s477 = smul.u32 16, %s30
        %v478 = vld [vmem:[%s408] sm:$0xff]
        %v479 = vld [vmem:[%s408 + $0x8] sm:$0xff]
        %v480 = vld [vmem:[%s408 + $0x10] sm:$0xff]
        %v481 = vld [vmem:[%s408 + $0x18] sm:$0xff]
        %v482 = vld [vmem:[%s408 + $0x20] sm:$0xff]
        %v483 = vld [vmem:[%s408 + $0x28] sm:$0xff]
        %v484 = vld [vmem:[%s408 + $0x30] sm:$0xff]
        %v485 = vld [vmem:[%s408 + $0x38] sm:$0xff]
        %v486 = vld [vmem:[%s408 + $0x40] sm:$0xff]
        %v487 = vld [vmem:[%s408 + $0x48] sm:$0xff]
        %v488 = vld [vmem:[%s408 + $0x50] sm:$0xff]
        %v489 = vld [vmem:[%s408 + $0x58] sm:$0xff]
        %v490 = vld [vmem:[%s408 + $0x60] sm:$0xff]
        %v491 = vld [vmem:[%s408 + $0x68] sm:$0xff]
        %v492 = vld [vmem:[%s408 + $0x70] sm:$0xff]
        %v493 = vld [vmem:[%s408 + $0x78] sm:$0xff]
        %v494 = vld [vmem:[%s408 + $0x80] sm:$0xff]
        %v495 = vld [vmem:[%s408 + $0x88] sm:$0xff]
        %v496 = vld [vmem:[%s408 + $0x90] sm:$0xff]
        %v497 = vld [vmem:[%s408 + $0x98] sm:$0xff]
        %v498 = vld [vmem:[%s408 + $0xa0] sm:$0xff]
        %v499 = vld [vmem:[%s408 + $0xa8] sm:$0xff]
        %v500 = vld [vmem:[%s408 + $0xb0] sm:$0xff]
        %v501 = vld [vmem:[%s408 + $0xb8] sm:$0xff]
        %v502 = vld [vmem:[%s408 + $0xc0] sm:$0xff]
        %v503 = vld [vmem:[%s408 + $0xc8] sm:$0xff]
        %v504 = vld [vmem:[%s408 + $0xd0] sm:$0xff]
        %v505 = vld [vmem:[%s408 + $0xd8] sm:$0xff]
        %v506 = vld [vmem:[%s408 + $0xe0] sm:$0xff]
        %v507 = vld [vmem:[%s408 + $0xe8] sm:$0xff]
        %v508 = vld [vmem:[%s408 + $0xf0] sm:$0xff]
        %v509 = vld [vmem:[%s408 + $0xf8] sm:$0xff]
        %v510 = vpack.c.bf16 %v480, %v478
        %v511 = vpack.c.bf16 %v481, %v479
        %v512 = vpack.c.bf16 %v484, %v482
        %v513 = vpack.c.bf16 %v485, %v483
        %v514 = vpack.c.bf16 %v488, %v486
        %v515 = vpack.c.bf16 %v489, %v487
        %v516 = vpack.c.bf16 %v492, %v490
        %v517 = vpack.c.bf16 %v493, %v491
        %v518 = vpack.c.bf16 %v496, %v494
        %v519 = vpack.c.bf16 %v497, %v495
        %v520 = vpack.c.bf16 %v500, %v498
        %v521 = vpack.c.bf16 %v501, %v499
        %v522 = vpack.c.bf16 %v504, %v502
        %v523 = vpack.c.bf16 %v505, %v503
        %v524 = vpack.c.bf16 %v508, %v506
        %v525 = vpack.c.bf16 %v509, %v507
        %v526 = vld [vmem:[#allocation5] sm:$0xf]
        %v527 = vld [vmem:[#allocation5 + $0x4] sm:$0xf]
        %v528 = vld [vmem:[#allocation5 + $0x8] sm:$0xf]
        %v529 = vld [vmem:[#allocation5 + $0xc] sm:$0xf]
        %v530 = vld [vmem:[#allocation5 + $0x10] sm:$0xf]
        %v531 = vld [vmem:[#allocation5 + $0x14] sm:$0xf]
        %v532 = vld [vmem:[#allocation5 + $0x18] sm:$0xf]
        %v533 = vld [vmem:[#allocation5 + $0x1c] sm:$0xf]
        %v534 = vld [vmem:[#allocation5 + $0x20] sm:$0xf]
        %v535 = vld [vmem:[#allocation5 + $0x24] sm:$0xf]
        %v536 = vld [vmem:[#allocation5 + $0x28] sm:$0xf]
        %v537 = vld [vmem:[#allocation5 + $0x2c] sm:$0xf]
        %v538 = vld [vmem:[#allocation5 + $0x30] sm:$0xf]
        %v539 = vld [vmem:[#allocation5 + $0x34] sm:$0xf]
        %v540 = vld [vmem:[#allocation5 + $0x38] sm:$0xf]
        %v541 = vld [vmem:[#allocation5 + $0x3c] sm:$0xf]
        %v542 = vld [vmem:[#allocation5 + $0x40] sm:$0xf]
        %v543 = vld [vmem:[#allocation5 + $0x44] sm:$0xf]
        %v544 = vld [vmem:[#allocation5 + $0x48] sm:$0xf]
        %v545 = vld [vmem:[#allocation5 + $0x4c] sm:$0xf]
        %v546 = vld [vmem:[#allocation5 + $0x50] sm:$0xf]
        %v547 = vld [vmem:[#allocation5 + $0x54] sm:$0xf]
        %v548 = vld [vmem:[#allocation5 + $0x58] sm:$0xf]
        %v549 = vld [vmem:[#allocation5 + $0x5c] sm:$0xf]
        %v550 = vld [vmem:[#allocation5 + $0x60] sm:$0xf]
        %v551 = vld [vmem:[#allocation5 + $0x64] sm:$0xf]
        %v552 = vld [vmem:[#allocation5 + $0x68] sm:$0xf]
        %v553 = vld [vmem:[#allocation5 + $0x6c] sm:$0xf]
        %v554 = vld [vmem:[#allocation5 + $0x70] sm:$0xf]
        %v555 = vld [vmem:[#allocation5 + $0x74] sm:$0xf]
        %v556 = vld [vmem:[#allocation5 + $0x78] sm:$0xf]
        %v557 = vld [vmem:[#allocation5 + $0x7c] sm:$0xf]
        %v558 = vld [vmem:[#allocation7] sm:$0x1]
        %v560 = vperm.slane %v558, 0
        %v594 = vunpack.c.l.b16 %v526
        %v595 = vunpack.c.l.b16 %v527
        %v596 = vunpack.c.l.b16 %v528
        %v597 = vunpack.c.l.b16 %v529
        %v598 = vunpack.c.l.b16 %v530
        %v599 = vunpack.c.l.b16 %v531
        %v600 = vunpack.c.l.b16 %v532
        %v601 = vunpack.c.l.b16 %v533
        %v602 = vunpack.c.l.b16 %v534
        %v603 = vunpack.c.l.b16 %v535
        %v604 = vunpack.c.l.b16 %v536
        %v605 = vunpack.c.l.b16 %v537
        %v606 = vunpack.c.l.b16 %v538
        %v607 = vunpack.c.l.b16 %v539
        %v608 = vunpack.c.l.b16 %v540
        %v609 = vunpack.c.l.b16 %v541
        %v610 = vunpack.c.l.b16 %v542
        %v611 = vunpack.c.l.b16 %v543
        %v612 = vunpack.c.l.b16 %v544
        %v613 = vunpack.c.l.b16 %v545
        %v614 = vunpack.c.l.b16 %v546
        %v615 = vunpack.c.l.b16 %v547
        %v616 = vunpack.c.l.b16 %v548
        %v617 = vunpack.c.l.b16 %v549
        %v618 = vunpack.c.l.b16 %v550
        %v619 = vunpack.c.l.b16 %v551
        %v620 = vunpack.c.l.b16 %v552
        %v621 = vunpack.c.l.b16 %v553
        %v622 = vunpack.c.l.b16 %v554
        %v623 = vunpack.c.l.b16 %v555
        %v624 = vunpack.c.l.b16 %v556
        %v625 = vunpack.c.l.b16 %v557
        %v626 = vpack.c.b16 %v595, %v594
        %v627 = vpack.c.b16 %v597, %v596
        %v628 = vpack.c.b16 %v599, %v598
        %v629 = vpack.c.b16 %v601, %v600
        %v630 = vpack.c.b16 %v603, %v602
        %v631 = vpack.c.b16 %v605, %v604
        %v632 = vpack.c.b16 %v607, %v606
        %v633 = vpack.c.b16 %v609, %v608
        %v634 = vpack.c.b16 %v611, %v610
        %v635 = vpack.c.b16 %v613, %v612
        %v636 = vpack.c.b16 %v615, %v614
        %v637 = vpack.c.b16 %v617, %v616
        %v638 = vpack.c.b16 %v619, %v618
        %v639 = vpack.c.b16 %v621, %v620
        %v640 = vpack.c.b16 %v623, %v622
        %v641 = vpack.c.b16 %v625, %v624
        %658 = vmatpush.bf16.msra.mxu0 %v633
        %659 = vmatpush.bf16.msra.mxu0 %v632
        %660 = vmatpush.bf16.msra.mxu0 %v631
        %661 = vmatpush.bf16.msra.mxu0 %v630
        %662 = vmatpush.bf16.msra.mxu0 %v629
        %663 = vmatpush.bf16.msra.mxu0 %v628
        %664 = vmatpush.bf16.msra.mxu0 %v627
        %665 = vmatpush.bf16.msra.mxu0 %v626
        %666 = vmatmul.bf16.gmra.mxu0 %v510
        %v667 = vpop.f32.mrf.mxu0
        %v668 = vadd.f32 %v560, %v667
        %v669 = vpop.f32.mrf.mxu0
        %v670 = vadd.f32 %v560, %v669
        %671 = vmatmul.bf16.gmra.mxu0 %v512
        %v672 = vpop.f32.mrf.mxu0
        %v673 = vadd.f32 %v560, %v672
        %v674 = vpop.f32.mrf.mxu0
        %v675 = vadd.f32 %v560, %v674
        %676 = vmatmul.bf16.gmra.mxu0 %v514
        %v677 = vpop.f32.mrf.mxu0
        %v678 = vadd.f32 %v560, %v677
        %v679 = vpop.f32.mrf.mxu0
        %v680 = vadd.f32 %v560, %v679
        %681 = vmatmul.bf16.gmra.mxu0 %v516
        %v682 = vpop.f32.mrf.mxu0
        %v683 = vadd.f32 %v560, %v682
        %v684 = vpop.f32.mrf.mxu0
        %v685 = vadd.f32 %v560, %v684
        %686 = vmatmul.bf16.gmra.mxu0 %v518
        %v687 = vpop.f32.mrf.mxu0
        %v688 = vadd.f32 %v560, %v687
        %v689 = vpop.f32.mrf.mxu0
        %v690 = vadd.f32 %v560, %v689
        %691 = vmatmul.bf16.gmra.mxu0 %v520
        %v692 = vpop.f32.mrf.mxu0
        %v693 = vadd.f32 %v560, %v692
        %v694 = vpop.f32.mrf.mxu0
        %v695 = vadd.f32 %v560, %v694
        %696 = vmatmul.bf16.gmra.mxu0 %v522
        %v697 = vpop.f32.mrf.mxu0
        %v698 = vadd.f32 %v560, %v697
        %v699 = vpop.f32.mrf.mxu0
        %v700 = vadd.f32 %v560, %v699
        %701 = vmatmul.bf16.gmra.mxu0 %v524
        %v702 = vpop.f32.mrf.mxu0
        %v703 = vadd.f32 %v560, %v702
        %v704 = vpop.f32.mrf.mxu0
        %v705 = vadd.f32 %v560, %v704
        %706 = vdwg.mxu0
        %707 = vmatpush.bf16.msra.mxu0 %v641
        %708 = vmatpush.bf16.msra.mxu0 %v640
        %709 = vmatpush.bf16.msra.mxu0 %v639
        %710 = vmatpush.bf16.msra.mxu0 %v638
        %711 = vmatpush.bf16.msra.mxu0 %v637
        %712 = vmatpush.bf16.msra.mxu0 %v636
        %713 = vmatpush.bf16.msra.mxu0 %v635
        %714 = vmatpush.bf16.msra.mxu0 %v634
        %715 = vmatmul.bf16.gmra.mxu0 %v511
        %v716 = vpop.f32.mrf.mxu0
        %v717 = vadd.f32 %v668, %v716
        %v718 = vpop.f32.mrf.mxu0
        %v719 = vadd.f32 %v670, %v718
        %720 = vmatmul.bf16.gmra.mxu0 %v513
        %v721 = vpop.f32.mrf.mxu0
        %v722 = vadd.f32 %v673, %v721
        %v723 = vpop.f32.mrf.mxu0
        %v724 = vadd.f32 %v675, %v723
        %725 = vmatmul.bf16.gmra.mxu0 %v515
        %v726 = vpop.f32.mrf.mxu0
        %v727 = vadd.f32 %v678, %v726
        %v728 = vpop.f32.mrf.mxu0
        %v729 = vadd.f32 %v680, %v728
        %730 = vmatmul.bf16.gmra.mxu0 %v517
        %v731 = vpop.f32.mrf.mxu0
        %v732 = vadd.f32 %v683, %v731
        %v733 = vpop.f32.mrf.mxu0
        %v734 = vadd.f32 %v685, %v733
        %735 = vmatmul.bf16.gmra.mxu0 %v519
        %v736 = vpop.f32.mrf.mxu0
        %v737 = vadd.f32 %v688, %v736
        %v738 = vpop.f32.mrf.mxu0
        %v739 = vadd.f32 %v690, %v738
        %740 = vmatmul.bf16.gmra.mxu0 %v521
        %v741 = vpop.f32.mrf.mxu0
        %v742 = vadd.f32 %v693, %v741
        %v743 = vpop.f32.mrf.mxu0
        %v744 = vadd.f32 %v695, %v743
        %745 = vmatmul.bf16.gmra.mxu0 %v523
        %v746 = vpop.f32.mrf.mxu0
        %v747 = vadd.f32 %v698, %v746
        %v748 = vpop.f32.mrf.mxu0
        %v749 = vadd.f32 %v700, %v748
        %750 = vmatmul.bf16.gmra.mxu0 %v525
        %v751 = vpop.f32.mrf.mxu0
        %v752 = vadd.f32 %v703, %v751
        %v753 = vpop.f32.mrf.mxu0
        %v754 = vadd.f32 %v705, %v753
        %755 = vdwg.mxu0
        %v756 = vmax.f32 %v717, 0.0
        %v757 = vmax.f32 %v719, 0.0
        %v758 = vmax.f32 %v722, 0.0
        %v759 = vmax.f32 %v724, 0.0
        %v760 = vmax.f32 %v727, 0.0
        %v761 = vmax.f32 %v729, 0.0
        %v762 = vmax.f32 %v732, 0.0
        %v763 = vmax.f32 %v734, 0.0
        %v764 = vmax.f32 %v737, 0.0
        %v765 = vmax.f32 %v739, 0.0
        %v766 = vmax.f32 %v742, 0.0
        %v767 = vmax.f32 %v744, 0.0
        %v768 = vmax.f32 %v747, 0.0
        %v769 = vmax.f32 %v749, 0.0
        %v770 = vmax.f32 %v752, 0.0
        %v771 = vmax.f32 %v754, 0.0
        %v772 = vpack.c.bf16 %v757, %v756
        %v773 = vpack.c.bf16 %v759, %v758
        %v774 = vpack.c.bf16 %v761, %v760
        %v775 = vpack.c.bf16 %v763, %v762
        %v776 = vpack.c.bf16 %v765, %v764
        %v777 = vpack.c.bf16 %v767, %v766
        %v778 = vpack.c.bf16 %v769, %v768
        %v779 = vpack.c.bf16 %v771, %v770
        %v780 = vld [vmem:[#allocation8] sm:$0xf]
        %v781 = vld [vmem:[#allocation8 + $0x4] sm:$0xf]
        %v782 = vld [vmem:[#allocation8 + $0x8] sm:$0xf]
        %v783 = vld [vmem:[#allocation8 + $0xc] sm:$0xf]
        %v784 = vld [vmem:[#allocation8 + $0x10] sm:$0xf]
        %v785 = vld [vmem:[#allocation8 + $0x14] sm:$0xf]
        %v786 = vld [vmem:[#allocation8 + $0x18] sm:$0xf]
        %v787 = vld [vmem:[#allocation8 + $0x1c] sm:$0xf]
        %v788 = vld [vmem:[#allocation8 + $0x20] sm:$0xf]
        %v789 = vld [vmem:[#allocation8 + $0x24] sm:$0xf]
        %v790 = vld [vmem:[#allocation8 + $0x28] sm:$0xf]
        %v791 = vld [vmem:[#allocation8 + $0x2c] sm:$0xf]
        %v792 = vld [vmem:[#allocation8 + $0x30] sm:$0xf]
        %v793 = vld [vmem:[#allocation8 + $0x34] sm:$0xf]
        %v794 = vld [vmem:[#allocation8 + $0x38] sm:$0xf]
        %v795 = vld [vmem:[#allocation8 + $0x3c] sm:$0xf]
        %v796 = vld [vmem:[#allocation10] sm:$0x1]
        %v798 = vperm.slane %v796, 0
        %v816 = vunpack.c.l.b16 %v780
        %v817 = vunpack.c.l.b16 %v781
        %v818 = vunpack.c.l.b16 %v782
        %v819 = vunpack.c.l.b16 %v783
        %v820 = vunpack.c.l.b16 %v784
        %v821 = vunpack.c.l.b16 %v785
        %v822 = vunpack.c.l.b16 %v786
        %v823 = vunpack.c.l.b16 %v787
        %v824 = vunpack.c.l.b16 %v788
        %v825 = vunpack.c.l.b16 %v789
        %v826 = vunpack.c.l.b16 %v790
        %v827 = vunpack.c.l.b16 %v791
        %v828 = vunpack.c.l.b16 %v792
        %v829 = vunpack.c.l.b16 %v793
        %v830 = vunpack.c.l.b16 %v794
        %v831 = vunpack.c.l.b16 %v795
        %v832 = vpack.c.b16 %v817, %v816
        %v833 = vpack.c.b16 %v819, %v818
        %v834 = vpack.c.b16 %v821, %v820
        %v835 = vpack.c.b16 %v823, %v822
        %v836 = vpack.c.b16 %v825, %v824
        %v837 = vpack.c.b16 %v827, %v826
        %v838 = vpack.c.b16 %v829, %v828
        %v839 = vpack.c.b16 %v831, %v830
        %848 = vmatpush.bf16.msra.mxu0 %v839
        %849 = vmatpush.bf16.msra.mxu0 %v838
        %850 = vmatpush.bf16.msra.mxu0 %v837
        %851 = vmatpush.bf16.msra.mxu0 %v836
        %852 = vmatpush.bf16.msra.mxu0 %v835
        %853 = vmatpush.bf16.msra.mxu0 %v834
        %854 = vmatpush.bf16.msra.mxu0 %v833
        %855 = vmatpush.bf16.msra.mxu0 %v832
        %856 = vmatmul.bf16.gmra.mxu0 %v772
        %v857 = vpop.f32.mrf.mxu0
        %v858 = vadd.f32 %v798, %v857
        %v859 = vpop.f32.mrf.mxu0
        %v860 = vadd.f32 %v798, %v859
        %861 = vmatmul.bf16.gmra.mxu0 %v773
        %v862 = vpop.f32.mrf.mxu0
        %v863 = vadd.f32 %v798, %v862
        %v864 = vpop.f32.mrf.mxu0
        %v865 = vadd.f32 %v798, %v864
        %866 = vmatmul.bf16.gmra.mxu0 %v774
        %v867 = vpop.f32.mrf.mxu0
        %v868 = vadd.f32 %v798, %v867
        %v869 = vpop.f32.mrf.mxu0
        %v870 = vadd.f32 %v798, %v869
        %871 = vmatmul.bf16.gmra.mxu0 %v775
        %v872 = vpop.f32.mrf.mxu0
        %v873 = vadd.f32 %v798, %v872
        %v874 = vpop.f32.mrf.mxu0
        %v875 = vadd.f32 %v798, %v874
        %876 = vmatmul.bf16.gmra.mxu0 %v776
        %v877 = vpop.f32.mrf.mxu0
        %v878 = vadd.f32 %v798, %v877
        %v879 = vpop.f32.mrf.mxu0
        %v880 = vadd.f32 %v798, %v879
        %881 = vmatmul.bf16.gmra.mxu0 %v777
        %v882 = vpop.f32.mrf.mxu0
        %v883 = vadd.f32 %v798, %v882
        %v884 = vpop.f32.mrf.mxu0
        %v885 = vadd.f32 %v798, %v884
        %886 = vmatmul.bf16.gmra.mxu0 %v778
        %v887 = vpop.f32.mrf.mxu0
        %v888 = vadd.f32 %v798, %v887
        %v889 = vpop.f32.mrf.mxu0
        %v890 = vadd.f32 %v798, %v889
        %891 = vmatmul.bf16.gmra.mxu0 %v779
        %v892 = vpop.f32.mrf.mxu0
        %v893 = vadd.f32 %v798, %v892
        %v894 = vpop.f32.mrf.mxu0
        %v895 = vadd.f32 %v798, %v894
        %896 = vdwg.mxu0
        %v897 = vmax.f32 %v858, 0.0
        %v898 = vmax.f32 %v860, 0.0
        %v899 = vmax.f32 %v863, 0.0
        %v900 = vmax.f32 %v865, 0.0
        %v901 = vmax.f32 %v868, 0.0
        %v902 = vmax.f32 %v870, 0.0
        %v903 = vmax.f32 %v873, 0.0
        %v904 = vmax.f32 %v875, 0.0
        %v905 = vmax.f32 %v878, 0.0
        %v906 = vmax.f32 %v880, 0.0
        %v907 = vmax.f32 %v883, 0.0
        %v908 = vmax.f32 %v885, 0.0
        %v909 = vmax.f32 %v888, 0.0
        %v910 = vmax.f32 %v890, 0.0
        %v911 = vmax.f32 %v893, 0.0
        %v912 = vmax.f32 %v895, 0.0
        %v913 = vpack.c.bf16 %v898, %v897
        %v914 = vpack.c.bf16 %v900, %v899
        %v915 = vpack.c.bf16 %v902, %v901
        %v916 = vpack.c.bf16 %v904, %v903
        %v917 = vpack.c.bf16 %v906, %v905
        %v918 = vpack.c.bf16 %v908, %v907
        %v919 = vpack.c.bf16 %v910, %v909
        %v920 = vpack.c.bf16 %v912, %v911
        %v921 = vld [vmem:[#allocation11] sm:$0xf]
        %v922 = vld [vmem:[#allocation11 + $0x4] sm:$0xf]
        %v923 = vld [vmem:[#allocation11 + $0x8] sm:$0xf]
        %v924 = vld [vmem:[#allocation11 + $0xc] sm:$0xf]
        %v925 = vld [vmem:[#allocation11 + $0x10] sm:$0xf]
        %v926 = vld [vmem:[#allocation11 + $0x14] sm:$0xf]
        %v927 = vld [vmem:[#allocation11 + $0x18] sm:$0xf]
        %v928 = vld [vmem:[#allocation11 + $0x1c] sm:$0xf]
        %v929 = vld [vmem:[#allocation11 + $0x20] sm:$0xf]
        %v930 = vld [vmem:[#allocation11 + $0x24] sm:$0xf]
        %v931 = vld [vmem:[#allocation11 + $0x28] sm:$0xf]
        %v932 = vld [vmem:[#allocation11 + $0x2c] sm:$0xf]
        %v933 = vld [vmem:[#allocation11 + $0x30] sm:$0xf]
        %v934 = vld [vmem:[#allocation11 + $0x34] sm:$0xf]
        %v935 = vld [vmem:[#allocation11 + $0x38] sm:$0xf]
        %v936 = vld [vmem:[#allocation11 + $0x3c] sm:$0xf]
        %v937 = vld [vmem:[%s6] sm:$0x1]
        %v939 = vperm.slane %v937, 0
        %v957 = vunpack.c.l.b16 %v921
        %v958 = vunpack.c.l.b16 %v922
        %v959 = vunpack.c.l.b16 %v923
        %v960 = vunpack.c.l.b16 %v924
        %v961 = vunpack.c.l.b16 %v925
        %v962 = vunpack.c.l.b16 %v926
        %v963 = vunpack.c.l.b16 %v927
        %v964 = vunpack.c.l.b16 %v928
        %v965 = vunpack.c.l.b16 %v929
        %v966 = vunpack.c.l.b16 %v930
        %v967 = vunpack.c.l.b16 %v931
        %v968 = vunpack.c.l.b16 %v932
        %v969 = vunpack.c.l.b16 %v933
        %v970 = vunpack.c.l.b16 %v934
        %v971 = vunpack.c.l.b16 %v935
        %v972 = vunpack.c.l.b16 %v936
        %v973 = vpack.c.b16 %v958, %v957
        %v974 = vpack.c.b16 %v960, %v959
        %v975 = vpack.c.b16 %v962, %v961
        %v976 = vpack.c.b16 %v964, %v963
        %v977 = vpack.c.b16 %v966, %v965
        %v978 = vpack.c.b16 %v968, %v967
        %v979 = vpack.c.b16 %v970, %v969
        %v980 = vpack.c.b16 %v972, %v971
        %989 = vmatpush.bf16.msra.mxu0 %v980
        %990 = vmatpush.bf16.msra.mxu0 %v979
        %991 = vmatpush.bf16.msra.mxu0 %v978
        %992 = vmatpush.bf16.msra.mxu0 %v977
        %993 = vmatpush.bf16.msra.mxu0 %v976
        %994 = vmatpush.bf16.msra.mxu0 %v975
        %995 = vmatpush.bf16.msra.mxu0 %v974
        %996 = vmatpush.bf16.msra.mxu0 %v973
        %997 = vmatmul.bf16.gmra.mxu0 %v913
        %v998 = vpop.f32.mrf.mxu0
        %v999 = vadd.f32 %v939, %v998
        %v1000 = vpop.f32.mrf.mxu0
        %v1001 = vadd.f32 %v939, %v1000
        %1002 = vmatmul.bf16.gmra.mxu0 %v914
        %v1003 = vpop.f32.mrf.mxu0
        %v1004 = vadd.f32 %v939, %v1003
        %v1005 = vpop.f32.mrf.mxu0
        %v1006 = vadd.f32 %v939, %v1005
        %1007 = vmatmul.bf16.gmra.mxu0 %v915
        %v1008 = vpop.f32.mrf.mxu0
        %v1009 = vadd.f32 %v939, %v1008
        %v1010 = vpop.f32.mrf.mxu0
        %v1011 = vadd.f32 %v939, %v1010
        %1012 = vmatmul.bf16.gmra.mxu0 %v916
        %v1013 = vpop.f32.mrf.mxu0
        %v1014 = vadd.f32 %v939, %v1013
        %v1015 = vpop.f32.mrf.mxu0
        %v1016 = vadd.f32 %v939, %v1015
        %1017 = vmatmul.bf16.gmra.mxu0 %v917
        %v1018 = vpop.f32.mrf.mxu0
        %v1019 = vadd.f32 %v939, %v1018
        %v1020 = vpop.f32.mrf.mxu0
        %v1021 = vadd.f32 %v939, %v1020
        %1022 = vmatmul.bf16.gmra.mxu0 %v918
        %v1023 = vpop.f32.mrf.mxu0
        %v1024 = vadd.f32 %v939, %v1023
        %v1025 = vpop.f32.mrf.mxu0
        %v1026 = vadd.f32 %v939, %v1025
        %1027 = vmatmul.bf16.gmra.mxu0 %v919
        %v1028 = vpop.f32.mrf.mxu0
        %v1029 = vadd.f32 %v939, %v1028
        %v1030 = vpop.f32.mrf.mxu0
        %v1031 = vadd.f32 %v939, %v1030
        %1032 = vmatmul.bf16.gmra.mxu0 %v920
        %v1033 = vpop.f32.mrf.mxu0
        %v1034 = vadd.f32 %v939, %v1033
        %v1035 = vpop.f32.mrf.mxu0
        %v1036 = vadd.f32 %v939, %v1035
        %1037 = vdwg.mxu0
        %v1038 = vmax.f32 %v999, 0.0
        %v1039 = vmax.f32 %v1001, 0.0
        %v1040 = vmax.f32 %v1004, 0.0
        %v1041 = vmax.f32 %v1006, 0.0
        %v1042 = vmax.f32 %v1009, 0.0
        %v1043 = vmax.f32 %v1011, 0.0
        %v1044 = vmax.f32 %v1014, 0.0
        %v1045 = vmax.f32 %v1016, 0.0
        %v1046 = vmax.f32 %v1019, 0.0
        %v1047 = vmax.f32 %v1021, 0.0
        %v1048 = vmax.f32 %v1024, 0.0
        %v1049 = vmax.f32 %v1026, 0.0
        %v1050 = vmax.f32 %v1029, 0.0
        %v1051 = vmax.f32 %v1031, 0.0
        %v1052 = vmax.f32 %v1034, 0.0
        %v1053 = vmax.f32 %v1036, 0.0
        %v1054 = vpack.c.bf16 %v1039, %v1038
        %v1055 = vpack.c.bf16 %v1041, %v1040
        %v1056 = vpack.c.bf16 %v1043, %v1042
        %v1057 = vpack.c.bf16 %v1045, %v1044
        %v1058 = vpack.c.bf16 %v1047, %v1046
        %v1059 = vpack.c.bf16 %v1049, %v1048
        %v1060 = vpack.c.bf16 %v1051, %v1050
        %v1061 = vpack.c.bf16 %v1053, %v1052
        %v1062 = vld [vmem:[#allocation13] sm:$0xff]
        %v1063 = vld [vmem:[#allocation13 + $0x8] sm:$0xff]
        %v1064 = vld [vmem:[#allocation13 + $0x10] sm:$0xff]
        %v1065 = vld [vmem:[#allocation13 + $0x18] sm:$0xff]
        %v1066 = vld [vmem:[#allocation13 + $0x20] sm:$0xff]
        %v1067 = vld [vmem:[#allocation13 + $0x28] sm:$0xff]
        %v1068 = vld [vmem:[#allocation13 + $0x30] sm:$0xff]
        %v1069 = vld [vmem:[#allocation13 + $0x38] sm:$0xff]
        %v1070 = vld [vmem:[#allocation13 + $0x40] sm:$0xff]
        %v1071 = vld [vmem:[#allocation13 + $0x48] sm:$0xff]
        %v1072 = vld [vmem:[#allocation13 + $0x50] sm:$0xff]
        %v1073 = vld [vmem:[#allocation13 + $0x58] sm:$0xff]
        %v1074 = vld [vmem:[#allocation13 + $0x60] sm:$0xff]
        %v1075 = vld [vmem:[#allocation13 + $0x68] sm:$0xff]
        %v1076 = vld [vmem:[#allocation13 + $0x70] sm:$0xff]
        %v1077 = vld [vmem:[#allocation13 + $0x78] sm:$0xff]
        %v1078 = vld [vmem:[%s8] sm:$0x3]
        %v1080 = vperm.slane %v1078, 0
        %v1081 = vperm.slane %v1078, 1
        %v1100 = vunpack.c.l.b16 %v1062
        %v1101 = vunpack.c.h.b16 %v1062
        %v1102 = vunpack.c.l.b16 %v1063
        %v1103 = vunpack.c.h.b16 %v1063
        %v1104 = vunpack.c.l.b16 %v1064
        %v1105 = vunpack.c.h.b16 %v1064
        %v1106 = vunpack.c.l.b16 %v1065
        %v1107 = vunpack.c.h.b16 %v1065
        %v1108 = vunpack.c.l.b16 %v1066
        %v1109 = vunpack.c.h.b16 %v1066
        %v1110 = vunpack.c.l.b16 %v1067
        %v1111 = vunpack.c.h.b16 %v1067
        %v1112 = vunpack.c.l.b16 %v1068
        %v1113 = vunpack.c.h.b16 %v1068
        %v1114 = vunpack.c.l.b16 %v1069
        %v1115 = vunpack.c.h.b16 %v1069
        %v1116 = vunpack.c.l.b16 %v1070
        %v1117 = vunpack.c.h.b16 %v1070
        %v1118 = vunpack.c.l.b16 %v1071
        %v1119 = vunpack.c.h.b16 %v1071
        %v1120 = vunpack.c.l.b16 %v1072
        %v1121 = vunpack.c.h.b16 %v1072
        %v1122 = vunpack.c.l.b16 %v1073
        %v1123 = vunpack.c.h.b16 %v1073
        %v1124 = vunpack.c.l.b16 %v1074
        %v1125 = vunpack.c.h.b16 %v1074
        %v1126 = vunpack.c.l.b16 %v1075
        %v1127 = vunpack.c.h.b16 %v1075
        %v1128 = vunpack.c.l.b16 %v1076
        %v1129 = vunpack.c.h.b16 %v1076
        %v1130 = vunpack.c.l.b16 %v1077
        %v1131 = vunpack.c.h.b16 %v1077
        %v1132 = vpack.c.b16 %v1102, %v1100
        %v1133 = vpack.c.b16 %v1103, %v1101
        %v1134 = vpack.c.b16 %v1106, %v1104
        %v1135 = vpack.c.b16 %v1107, %v1105
        %v1136 = vpack.c.b16 %v1110, %v1108
        %v1137 = vpack.c.b16 %v1111, %v1109
        %v1138 = vpack.c.b16 %v1114, %v1112
        %v1139 = vpack.c.b16 %v1115, %v1113
        %v1140 = vpack.c.b16 %v1118, %v1116
        %v1141 = vpack.c.b16 %v1119, %v1117
        %v1142 = vpack.c.b16 %v1122, %v1120
        %v1143 = vpack.c.b16 %v1123, %v1121
        %v1144 = vpack.c.b16 %v1126, %v1124
        %v1145 = vpack.c.b16 %v1127, %v1125
        %v1146 = vpack.c.b16 %v1130, %v1128
        %v1147 = vpack.c.b16 %v1131, %v1129
        %1164 = vmatpush.bf16.msra.mxu0 %v1146
        %1165 = vmatpush.bf16.msra.mxu0 %v1144
        %1166 = vmatpush.bf16.msra.mxu0 %v1142
        %1167 = vmatpush.bf16.msra.mxu0 %v1140
        %1168 = vmatpush.bf16.msra.mxu0 %v1138
        %1169 = vmatpush.bf16.msra.mxu0 %v1136
        %1170 = vmatpush.bf16.msra.mxu0 %v1134
        %1171 = vmatpush.bf16.msra.mxu0 %v1132
        %1172 = vmatmul.bf16.gmra.mxu0 %v1054
        %v1173 = vpop.f32.mrf.mxu0
        %v1174 = vadd.f32 %v1080, %v1173
        %v1175 = vpop.f32.mrf.mxu0
        %v1176 = vadd.f32 %v1080, %v1175
        %1177 = vmatmul.bf16.gmra.mxu0 %v1055
        %v1178 = vpop.f32.mrf.mxu0
        %v1179 = vadd.f32 %v1080, %v1178
        %v1180 = vpop.f32.mrf.mxu0
        %v1181 = vadd.f32 %v1080, %v1180
        %1182 = vmatmul.bf16.gmra.mxu0 %v1056
        %v1183 = vpop.f32.mrf.mxu0
        %v1184 = vadd.f32 %v1080, %v1183
        %v1185 = vpop.f32.mrf.mxu0
        %v1186 = vadd.f32 %v1080, %v1185
        %1187 = vmatmul.bf16.gmra.mxu0 %v1057
        %v1188 = vpop.f32.mrf.mxu0
        %v1189 = vadd.f32 %v1080, %v1188
        %v1190 = vpop.f32.mrf.mxu0
        %v1191 = vadd.f32 %v1080, %v1190
        %1192 = vmatmul.bf16.gmra.mxu0 %v1058
        %v1193 = vpop.f32.mrf.mxu0
        %v1194 = vadd.f32 %v1080, %v1193
        %v1195 = vpop.f32.mrf.mxu0
        %v1196 = vadd.f32 %v1080, %v1195
        %1197 = vmatmul.bf16.gmra.mxu0 %v1059
        %v1198 = vpop.f32.mrf.mxu0
        %v1199 = vadd.f32 %v1080, %v1198
        %v1200 = vpop.f32.mrf.mxu0
        %v1201 = vadd.f32 %v1080, %v1200
        %1202 = vmatmul.bf16.gmra.mxu0 %v1060
        %v1203 = vpop.f32.mrf.mxu0
        %v1204 = vadd.f32 %v1080, %v1203
        %v1205 = vpop.f32.mrf.mxu0
        %v1206 = vadd.f32 %v1080, %v1205
        %1207 = vmatmul.bf16.gmra.mxu0 %v1061
        %v1208 = vpop.f32.mrf.mxu0
        %v1209 = vadd.f32 %v1080, %v1208
        %v1210 = vpop.f32.mrf.mxu0
        %v1211 = vadd.f32 %v1080, %v1210
        %1212 = vdwg.mxu0
        %1213 = vmatpush.bf16.msra.mxu0 %v1147
        %1214 = vmatpush.bf16.msra.mxu0 %v1145
        %1215 = vmatpush.bf16.msra.mxu0 %v1143
        %1216 = vmatpush.bf16.msra.mxu0 %v1141
        %1217 = vmatpush.bf16.msra.mxu0 %v1139
        %1218 = vmatpush.bf16.msra.mxu0 %v1137
        %1219 = vmatpush.bf16.msra.mxu0 %v1135
        %1220 = vmatpush.bf16.msra.mxu0 %v1133
        %1221 = vmatmul.bf16.gmra.mxu0 %v1054
        %v1222 = vpop.f32.mrf.mxu0
        %v1223 = vadd.f32 %v1081, %v1222
        %v1224 = vpop.f32.mrf.mxu0
        %v1225 = vadd.f32 %v1081, %v1224
        %1226 = vmatmul.bf16.gmra.mxu0 %v1055
        %v1227 = vpop.f32.mrf.mxu0
        %v1228 = vadd.f32 %v1081, %v1227
        %v1229 = vpop.f32.mrf.mxu0
        %v1230 = vadd.f32 %v1081, %v1229
        %1231 = vmatmul.bf16.gmra.mxu0 %v1056
        %v1232 = vpop.f32.mrf.mxu0
        %v1233 = vadd.f32 %v1081, %v1232
        %v1234 = vpop.f32.mrf.mxu0
        %v1235 = vadd.f32 %v1081, %v1234
        %1236 = vmatmul.bf16.gmra.mxu0 %v1057
        %v1237 = vpop.f32.mrf.mxu0
        %v1238 = vadd.f32 %v1081, %v1237
        %v1239 = vpop.f32.mrf.mxu0
        %v1240 = vadd.f32 %v1081, %v1239
        %1241 = vmatmul.bf16.gmra.mxu0 %v1058
        %v1242 = vpop.f32.mrf.mxu0
        %v1243 = vadd.f32 %v1081, %v1242
        %v1244 = vpop.f32.mrf.mxu0
        %v1245 = vadd.f32 %v1081, %v1244
        %1246 = vmatmul.bf16.gmra.mxu0 %v1059
        %v1247 = vpop.f32.mrf.mxu0
        %v1248 = vadd.f32 %v1081, %v1247
        %v1249 = vpop.f32.mrf.mxu0
        %v1250 = vadd.f32 %v1081, %v1249
        %1251 = vmatmul.bf16.gmra.mxu0 %v1060
        %v1252 = vpop.f32.mrf.mxu0
        %v1253 = vadd.f32 %v1081, %v1252
        %v1254 = vpop.f32.mrf.mxu0
        %v1255 = vadd.f32 %v1081, %v1254
        %1256 = vmatmul.bf16.gmra.mxu0 %v1061
        %v1257 = vpop.f32.mrf.mxu0
        %v1258 = vadd.f32 %v1081, %v1257
        %v1259 = vpop.f32.mrf.mxu0
        %v1260 = vadd.f32 %v1081, %v1259
        %1261 = vdwg.mxu0
        %v1262 = vld [vmem:[%s9] sm:$0x3]
        %vm1263 = vcmp.gt.f32.partialorder %v1262, 0.5
        %v1264 = vsel %vm1263, 1, 0
        %v1265 = vperm.slane %v1264, 0
        %v1266 = vperm.slane %v1264, 1
        %vm1267 = vcmp.eq.s32.totalorder %v1265, 1
        %vm1268 = vcmp.eq.s32.totalorder %v1266, 1
        %v1269 = vsel %vm1267, %v478, %v1174
        %v1270 = vsel %vm1268, %v479, %v1223
        %v1271 = vsel %vm1267, %v480, %v1176
        %v1272 = vsel %vm1268, %v481, %v1225
        %v1273 = vsel %vm1267, %v482, %v1179
        %v1274 = vsel %vm1268, %v483, %v1228
        %v1275 = vsel %vm1267, %v484, %v1181
        %v1276 = vsel %vm1268, %v485, %v1230
        %v1277 = vsel %vm1267, %v486, %v1184
        %v1278 = vsel %vm1268, %v487, %v1233
        %v1279 = vsel %vm1267, %v488, %v1186
        %v1280 = vsel %vm1268, %v489, %v1235
        %v1281 = vsel %vm1267, %v490, %v1189
        %v1282 = vsel %vm1268, %v491, %v1238
        %v1283 = vsel %vm1267, %v492, %v1191
        %v1284 = vsel %vm1268, %v493, %v1240
        %v1285 = vsel %vm1267, %v494, %v1194
        %v1286 = vsel %vm1268, %v495, %v1243
        %v1287 = vsel %vm1267, %v496, %v1196
        %v1288 = vsel %vm1268, %v497, %v1245
        %v1289 = vsel %vm1267, %v498, %v1199
        %v1290 = vsel %vm1268, %v499, %v1248
        %v1291 = vsel %vm1267, %v500, %v1201
        %v1292 = vsel %vm1268, %v501, %v1250
        %v1293 = vsel %vm1267, %v502, %v1204
        %v1294 = vsel %vm1268, %v503, %v1253
        %v1295 = vsel %vm1267, %v504, %v1206
        %v1296 = vsel %vm1268, %v505, %v1255
        %v1297 = vsel %vm1267, %v506, %v1209
        %v1298 = vsel %vm1268, %v507, %v1258
        %v1299 = vsel %vm1267, %v508, %v1211
        %v1300 = vsel %vm1268, %v509, %v1260
        %1301 = vst [vmem:[%s475] sm:$0xff] %v1269
        %1302 = vst [vmem:[%s475 + $0x8] sm:$0xff] %v1270
        %1303 = vst [vmem:[%s475 + $0x10] sm:$0xff] %v1271
        %1304 = vst [vmem:[%s475 + $0x18] sm:$0xff] %v1272
        %1305 = vst [vmem:[%s475 + $0x20] sm:$0xff] %v1273
        %1306 = vst [vmem:[%s475 + $0x28] sm:$0xff] %v1274
        %1307 = vst [vmem:[%s475 + $0x30] sm:$0xff] %v1275
        %1308 = vst [vmem:[%s475 + $0x38] sm:$0xff] %v1276
        %1309 = vst [vmem:[%s475 + $0x40] sm:$0xff] %v1277
        %1310 = vst [vmem:[%s475 + $0x48] sm:$0xff] %v1278
        %1311 = vst [vmem:[%s475 + $0x50] sm:$0xff] %v1279
        %1312 = vst [vmem:[%s475 + $0x58] sm:$0xff] %v1280
        %1313 = vst [vmem:[%s475 + $0x60] sm:$0xff] %v1281
        %1314 = vst [vmem:[%s475 + $0x68] sm:$0xff] %v1282
        %1315 = vst [vmem:[%s475 + $0x70] sm:$0xff] %v1283
        %1316 = vst [vmem:[%s475 + $0x78] sm:$0xff] %v1284
        %1317 = vst [vmem:[%s475 + $0x80] sm:$0xff] %v1285
        %1318 = vst [vmem:[%s475 + $0x88] sm:$0xff] %v1286
        %1319 = vst [vmem:[%s475 + $0x90] sm:$0xff] %v1287
        %1320 = vst [vmem:[%s475 + $0x98] sm:$0xff] %v1288
        %1321 = vst [vmem:[%s475 + $0xa0] sm:$0xff] %v1289
        %1322 = vst [vmem:[%s475 + $0xa8] sm:$0xff] %v1290
        %1323 = vst [vmem:[%s475 + $0xb0] sm:$0xff] %v1291
        %1324 = vst [vmem:[%s475 + $0xb8] sm:$0xff] %v1292
        %1325 = vst [vmem:[%s475 + $0xc0] sm:$0xff] %v1293
        %1326 = vst [vmem:[%s475 + $0xc8] sm:$0xff] %v1294
        %1327 = vst [vmem:[%s475 + $0xd0] sm:$0xff] %v1295
        %1328 = vst [vmem:[%s475 + $0xd8] sm:$0xff] %v1296
        %1329 = vst [vmem:[%s475 + $0xe0] sm:$0xff] %v1297
        %1330 = vst [vmem:[%s475 + $0xe8] sm:$0xff] %v1298
        %1331 = vst [vmem:[%s475 + $0xf0] sm:$0xff] %v1299
        %1332 = vst [vmem:[%s475 + $0xf8] sm:$0xff] %v1300
        %s1333 = sand.u32 %s253, 1
        %s1334 = scalar_lea.sflag [#allocation4], %s1333
        %s1335 = sand.u32 %s253, 1
        %s1336 = smul.addr %s1335, 256
        %s1337 = scalar_lea.vmem [#allocation14], %s1336
        // Predicated region
        $region89: #{forward.1} parent=59 // pred_check
          %p1338 = pneg %p263
        $region90: #{forward.1} parent=59 // pred_check_branch
          %1340 = sbr.rel (%p1338) target = $region92
        $region91: #{forward.1} parent=59 // pred_region
          %s1341 = smul.u32 16, %s30
          %1343 = vsyncadd %s1334, 0
          %s1344 = smul.addr %s1341, 2
          %s1345 = smul.addr %s1344, 8
          %s1346 = scalar_lea.hbm %s10, %s1345
          %s1347 = sshll.u32 %s1337, 4
          %s1348 = int_to_ptr.vmem [resolvable:$true] %s1347
          %s1349 = sshll.u32 %s1346, 4
          %s1350 = int_to_ptr.hbm [resolvable:$true] %s1349
          %1355 = dma.vmem_to_hbm [thread:$0]  %s1348, 4096, %s1350, %s1334, 256, 256, 16
        $region92: #{forward.1} parent=59 // pred_fallthru
          _
      $region60: #{forward.1} parent=5 // pred_fallthru
        _
      %p1356 = scmp.le.s32.totalorder 2, %s25
      // Predicated region
      $region93: #{forward.1} parent=5 // pred_check
        %p1357 = pneg %p1356
      $region94: #{forward.1} parent=5 // pred_check_branch
        %1359 = sbr.rel (%p1357) target = $region96
      $region95: #{forward.1} parent=5 // pred_region
        %s1360 = ssub.s32 %s25, 2
        // Predicated region
        $region97: #{forward.1} parent=95 // pred_check
          %p1361 = pneg %p269
        $region98: #{forward.1} parent=95 // pred_check_branch
          %1363 = sbr.rel (%p1361) target = $region100
        $region99: #{forward.1} parent=95 // pred_region
          %s1364 = sand.u32 %s254, 1
          %s1365 = scalar_lea.sflag [#allocation4], %s1364
          %s1366 = sand.u32 %s254, 1
          %s1367 = smul.addr %s1366, 256
          %s1368 = scalar_lea.vmem [#allocation14], %s1367
          %1370 = dma.done %s1365, 4096
        $region100: #{forward.1} parent=95 // pred_fallthru
          _
      $region96: #{forward.1} parent=5 // pred_fallthru
        _
    $region6: #{forward.1} parent=1 // loop_footer
      %s29 = sadd.s32 1, %s25
    $region7: #{forward.1} parent=1 // loop_footer_branch
      %24 = sbr.rel target = $region3
    $region8: #{forward.1} parent=1 // loop_exit
      _
    %1371 = vsyncpa [#allocation3], 1
    %s1372 = scalar_lea.sflag [#allocation3], 1
    %1373 = vsyncpa %s1372, 1
    %1374 = vsyncpa [#allocation6], 1
    %1375 = vsyncpa [#allocation9], 1
    %1376 = vsyncpa [#allocation12], 1
    %1377 = vsyncpa [#allocation4], 1
    %s1378 = scalar_lea.sflag [#allocation4], 1
    %1379 = vsyncpa %s1378, 1

</llo_original>
